<compile_context>
chip_gen: v7x
topology: tpu7x:2x2x1
jax: 0.10.0
libtpu: 0.0.40
codegen_flags: <defaults>
</compile_context>

<pallas_src>
import functools

import jax
import jax.numpy as jnp
from jax import lax
from jax.experimental import pallas as pl
from jax.experimental.pallas import tpu as pltpu

LRELU_SLOPE = 0.3
D_MODEL = 32
EXPANSION = 2
KERNEL_SIZE = 7
PAD = KERNEL_SIZE // 2          # tools.calc_same_padding(7)[0] == 3
INNER = D_MODEL * EXPANSION     # 64
EPS = 1e-5
HALO = 8                        # per-sample zero halo (multiple of 8, >= PAD)


def conformer_conv_kernel(
    T,            # static: time steps per sample (closure arg)
    x_ref,        # (bt*T, D)
    v32_ref,      # (3, D)        rows: ln_1 gamma, ln_1 beta, conv_2 bias
    v64_ref,      # (K+3, INNER)  rows: dw weight[0..K-1], dw bias, GN gamma, GN beta
    b1_ref,       # (1, 2*INNER)
    w1_ref,       # (D, 2*INNER)
    w2_ref,       # (INNER, D)
    o_ref,        # (bt*T, D)
    pad_ref,      # VMEM scratch (bt, T + 2*HALO, INNER)
):
    rows, d = x_ref.shape
    nb = rows // T
    inner = v64_ref.shape[1]
    tpad = T + 2 * HALO
    npad = nb * tpad

    x = x_ref[...]                                   # (rows, D)

    # --- ln_1: LayerNorm over d_model (single-pass stats, fused scale/shift) ---
    g1 = v32_ref[0, :]
    bt1 = v32_ref[1, :]
    mu = jnp.mean(x, axis=-1, keepdims=True)
    var = jnp.mean(x * x, axis=-1, keepdims=True) - mu * mu
    scale1 = lax.rsqrt(var + EPS) * g1
    xn = x * scale1 + (bt1 - mu * scale1)

    # --- conv_1 (pointwise, lane-dense N = 2*INNER = 128) + GLU ---
    y = jnp.dot(xn, w1_ref[...], preferred_element_type=jnp.float32) + b1_ref[0, :]
    g = y[:, :inner] * jax.nn.sigmoid(y[:, inner:])  # (rows, INNER)

    # --- depthwise conv1d, kernel_size=7, per-sample same (zero) padding ---
    # Stage g into a zero-halo padded buffer; halo (8 rows) >= PAD (3), so taps
    # can only ever read zeros across sample boundaries / slab ends -> no masks.
    zeros_halo = jnp.zeros((nb, HALO, inner), jnp.float32)
    pad_ref[:, :HALO, :] = zeros_halo
    pad_ref[:, HALO + T:, :] = zeros_halo
    pad_ref[:, HALO:HALO + T, :] = g.reshape(nb, T, inner)
    gp = pad_ref[...].reshape(npad, inner)           # flat padded slab

    zp = gp * v64_ref[PAD, :] + v64_ref[KERNEL_SIZE, :]   # center tap + bias
    for s in range(1, PAD + 1):                           # static unroll
        # roll(x, npad - s)[r] == x[r + s];  roll(x, s)[r] == x[r - s]
        zp = zp + pltpu.roll(gp, shift=npad - s, axis=0) * v64_ref[PAD + s, :]
        zp = zp + pltpu.roll(gp, shift=s, axis=0) * v64_ref[PAD - s, :]
    z3 = zp.reshape(nb, tpad, inner)[:, HALO:HALO + T, :]  # (nb, T, INNER)

    # --- ln_2: GroupNorm(1, inner) -> per-sample stats over (T, C), one pass ---
    g2 = v64_ref[KERNEL_SIZE + 1, :]
    bt2 = v64_ref[KERNEL_SIZE + 2, :]
    inv_cnt = 1.0 / float(T * inner)
    s1 = jnp.sum(jnp.sum(z3, axis=2, keepdims=True), axis=1, keepdims=True) * inv_cnt
    s2 = jnp.sum(jnp.sum(z3 * z3, axis=2, keepdims=True), axis=1, keepdims=True) * inv_cnt
    var2 = s2 - s1 * s1
    scale2 = lax.rsqrt(var2 + EPS) * g2              # (nb, 1, INNER)
    shift2 = bt2 - s1 * scale2
    zn = z3 * scale2 + shift2

    # --- LeakyReLU(0.3) as a single max ---
    a = jnp.maximum(zn, LRELU_SLOPE * zn).reshape(rows, inner)

    # --- conv_2 (pointwise) ---
    out = jnp.dot(a, w2_ref[...], preferred_element_type=jnp.float32) + v32_ref[2, :]

    # TODO(synk): dropout omitted (eval / inference mode -> identity)
    o_ref[...] = out.astype(o_ref.dtype)


def _device_defaults():
    """Generation-aware (target rows per grid step, scoped-VMEM budget)."""
    kind = ""
    try:
        kind = jax.devices()[0].device_kind.lower()
    except Exception:
        pass
    if "v7" in kind or "7x" in kind:
        # 2 TensorCores but only 64 MiB physical VMEM: mid slabs, >=2 grid steps.
        return 2048, 40 << 20
    if "v6" in kind or "trillium" in kind:
        return 8192, 80 << 20
    if "v5" in kind:
        return 8192, 80 << 20          # v5e scoped default is only 16 MiB -> raise
    return 4096, 48 << 20


def _pick_batch_tile(B, T, target_rows):
    """Largest divisor of B whose slab fits target_rows, preferring >=2 (even) steps."""
    divs = [d for d in range(1, B + 1) if B % d == 0]
    fit = [d for d in divs if d * T <= target_rows]
    if not fit:
        return 1
    multi = [d for d in fit if B // d >= 2]
    if multi:
        even = [d for d in multi if (B // d) % 2 == 0]
        return max(even) if even else max(multi)
    return max(fit)


def conformer_conv_module(x, params, batch_tile=None):
    """x: (B, T, d_model) float32 -> (B, T, d_model)."""
    B, T, D = x.shape
    assert T % 8 == 0, "time dim must be a multiple of 8 for the batched layout"
    (g1, bt1, w1, b1, dww, dwb, g2, bt2, w2, b2) = params
    inner = dww.shape[1]

    # Pack the small per-row parameters into two refs (fewer buffers / DMAs).
    v32 = jnp.concatenate([g1, bt1, b2], axis=0)            # (3, D)
    v64 = jnp.concatenate([dww, dwb, g2, bt2], axis=0)      # (K+3, INNER)
    x2 = x.reshape(B * T, D)

    target_rows, vmem_bytes = _device_defaults()
    bt = batch_tile if batch_tile is not None else _pick_batch_tile(B, T, target_rows)
    assert B % bt == 0, "batch_tile must divide B"
    grid = (B // bt,)

    def full(a):
        nd = a.ndim
        return pl.BlockSpec(a.shape, lambda i, _nd=nd: (0,) * _nd)

    out2 = pl.pallas_call(
        functools.partial(conformer_conv_kernel, T),
        out_shape=jax.ShapeDtypeStruct((B * T, D), x.dtype),
        grid=grid,
        in_specs=[
            pl.BlockSpec((bt * T, D), lambda i: (i, 0)),     # activation slab
            full(v32), full(v64), full(b1), full(w1), full(w2),
        ],
        out_specs=pl.BlockSpec((bt * T, D), lambda i: (i, 0)),
        scratch_shapes=[pltpu.VMEM((bt, T + 2 * HALO, inner), jnp.float32)],
        compiler_params=pltpu.CompilerParams(
            dimension_semantics=("parallel",),
            vmem_limit_bytes=vmem_bytes),
    )(x2, v32, v64, b1, w1, w2)
    return out2.reshape(B, T, D)


def reference(x, params):
    """Pure-JAX reference mirroring the PyTorch module semantics."""
    (g1, bt1, w1, b1, dww, dwb, g2, bt2, w2, b2) = params
    B, T, D = x.shape
    mu = x.mean(-1, keepdims=True)
    var = ((x - mu) ** 2).mean(-1, keepdims=True)
    xn = (x - mu) / jnp.sqrt(var + EPS) * g1[0] + bt1[0]
    y = xn @ w1 + b1[0]
    out_half, gate = y[..., :INNER], y[..., INNER:]
    g = out_half * jax.nn.sigmoid(gate)
    gp = jnp.pad(g, ((0, 0), (PAD, PAD), (0, 0)))
    z = jnp.zeros_like(g) + dwb[0]
    for k in range(KERNEL_SIZE):
        z = z + gp[:, k:k + T, :] * dww[k]
    mu2 = z.mean(axis=(1, 2), keepdims=True)
    var2 = ((z - mu2) ** 2).mean(axis=(1, 2), keepdims=True)
    zn = (z - mu2) / jnp.sqrt(var2 + EPS) * g2[0] + bt2[0]
    a = jnp.where(zn >= 0, zn, LRELU_SLOPE * zn)
    return a @ w2 + b2[0]


def make_params(key):
    ks = jax.random.split(key, 10)
    g1 = jnp.ones((1, D_MODEL), jnp.float32)
    bt1 = jnp.zeros((1, D_MODEL), jnp.float32)
    w1 = 0.1 * jax.random.normal(ks[0], (D_MODEL, 2 * INNER), jnp.float32)
    b1 = 0.1 * jax.random.normal(ks[1], (1, 2 * INNER), jnp.float32)
    dww = 0.1 * jax.random.normal(ks[2], (KERNEL_SIZE, INNER), jnp.float32)
    dwb = 0.1 * jax.random.normal(ks[3], (1, INNER), jnp.float32)
    g2 = 1.0 + 0.1 * jax.random.normal(ks[4], (1, INNER), jnp.float32)
    bt2 = 0.1 * jax.random.normal(ks[5], (1, INNER), jnp.float32)
    w2 = 0.1 * jax.random.normal(ks[6], (INNER, D_MODEL), jnp.float32)
    b2 = 0.1 * jax.random.normal(ks[7], (1, D_MODEL), jnp.float32)
    return (g1, bt1, w1, b1, dww, dwb, g2, bt2, w2, b2)


if __name__ == "__main__":
    B, T = 16, 16
    key = jax.random.PRNGKey(0)
    k_x, k_p = jax.random.split(key)
    x = jax.random.normal(k_x, (B, T, D_MODEL), jnp.float32)
    params = make_params(k_p)

    # Auto tile picker -> bt=8, grid=(2,) for this small demo (multi-step grid).
    out = conformer_conv_module(x, params)
    out = jax.block_until_ready(out)

    ref = reference(x, params)
    assert out.shape == (B, T, D_MODEL)
    assert jnp.allclose(out, ref, rtol=1e-4, atol=1e-4), "mismatch vs JAX reference"
    print("KERNEL_OK")
</pallas_src>

<mosaic_0001>
module attributes {stable_mosaic.version = 11 : i64} {
  func.func @conformer_conv_kernel(%arg0: i32, %arg1: memref<128x32xf32, #tpu.memory_space<vmem>>, %arg2: memref<3x32xf32, #tpu.memory_space<vmem>>, %arg3: memref<10x64xf32, #tpu.memory_space<vmem>>, %arg4: memref<1x128xf32, #tpu.memory_space<vmem>>, %arg5: memref<32x128xf32, #tpu.memory_space<vmem>>, %arg6: memref<64x32xf32, #tpu.memory_space<vmem>>, %arg7: memref<128x32xf32, #tpu.memory_space<vmem>>, %arg8: memref<8x32x64xf32, #tpu.memory_space<vmem>>) attributes {dimension_semantics = [#tpu.dimension_semantics<parallel>], iteration_bounds = array<i64: 2>, scalar_prefetch = 0 : i64, scratch_operands = 1 : i64, tpu.core_type = #tpu.core_type<tc>, window_params = [{transform_indices = @transform_0, window_bounds = array<i64: 128, 32>}, {pipeline_mode = #tpu.pipeline_mode<synchronous>, transform_indices = @transform_1, window_bounds = array<i64: 3, 32>}, {pipeline_mode = #tpu.pipeline_mode<synchronous>, transform_indices = @transform_2, window_bounds = array<i64: 10, 64>}, {pipeline_mode = #tpu.pipeline_mode<synchronous>, transform_indices = @transform_3, window_bounds = array<i64: 1, 128>}, {pipeline_mode = #tpu.pipeline_mode<synchronous>, transform_indices = @transform_4, window_bounds = array<i64: 32, 128>}, {pipeline_mode = #tpu.pipeline_mode<synchronous>, transform_indices = @transform_5, window_bounds = array<i64: 64, 32>}, {transform_indices = @transform_6, window_bounds = array<i64: 128, 32>}]} {
    %c0 = arith.constant 0 : index
    %c0_0 = arith.constant 0 : index
    %0 = vector.load %arg1[%c0, %c0_0] : memref<128x32xf32, #tpu.memory_space<vmem>>, vector<128x32xf32>
    %c0_1 = arith.constant 0 : index
    %c0_2 = arith.constant 0 : index
    %1 = vector.load %arg2[%c0_1, %c0_2] : memref<3x32xf32, #tpu.memory_space<vmem>>, vector<1x32xf32>
    %2 = vector.shape_cast %1 : vector<1x32xf32> to vector<32xf32>
    %c1 = arith.constant 1 : index
    %c0_3 = arith.constant 0 : index
    %3 = vector.load %arg2[%c1, %c0_3] : memref<3x32xf32, #tpu.memory_space<vmem>>, vector<1x32xf32>
    %4 = vector.shape_cast %3 : vector<1x32xf32> to vector<32xf32>
    %cst = arith.constant dense<0.000000e+00> : vector<128xf32>
    %5 = vector.multi_reduction <add>, %0, %cst [1] : vector<128x32xf32> to vector<128xf32>
    %6 = vector.shape_cast %5 : vector<128xf32> to vector<128x1xf32>
    %cst_4 = arith.constant 3.200000e+01 : f32
    %7 = vector.broadcast %cst_4 : f32 to vector<128x1xf32>
    %8 = arith.divf %6, %7 : vector<128x1xf32>
    %9 = arith.mulf %0, %0 : vector<128x32xf32>
    %cst_5 = arith.constant dense<0.000000e+00> : vector<128xf32>
    %10 = vector.multi_reduction <add>, %9, %cst_5 [1] : vector<128x32xf32> to vector<128xf32>
    %11 = vector.shape_cast %10 : vector<128xf32> to vector<128x1xf32>
    %cst_6 = arith.constant 3.200000e+01 : f32
    %12 = vector.broadcast %cst_6 : f32 to vector<128x1xf32>
    %13 = arith.divf %11, %12 : vector<128x1xf32>
    %14 = arith.mulf %8, %8 : vector<128x1xf32>
    %15 = arith.subf %13, %14 : vector<128x1xf32>
    %cst_7 = arith.constant 9.99999974E-6 : f32
    %16 = vector.broadcast %cst_7 : f32 to vector<128x1xf32>
    %17 = arith.addf %15, %16 : vector<128x1xf32>
    %18 = math.rsqrt %17 : vector<128x1xf32>
    %19 = vector.shape_cast %2 : vector<32xf32> to vector<1x32xf32>
    %20 = vector.broadcast %18 : vector<128x1xf32> to vector<128x32xf32>
    %21 = vector.broadcast %19 : vector<1x32xf32> to vector<128x32xf32>
    %22 = arith.mulf %20, %21 : vector<128x32xf32>
    %23 = arith.mulf %0, %22 : vector<128x32xf32>
    %24 = vector.broadcast %8 : vector<128x1xf32> to vector<128x32xf32>
    %25 = arith.mulf %24, %22 : vector<128x32xf32>
    %26 = vector.shape_cast %4 : vector<32xf32> to vector<1x32xf32>
    %27 = vector.broadcast %26 : vector<1x32xf32> to vector<128x32xf32>
    %28 = arith.subf %27, %25 : vector<128x32xf32>
    %29 = arith.addf %23, %28 : vector<128x32xf32>
    %c0_8 = arith.constant 0 : index
    %c0_9 = arith.constant 0 : index
    %30 = vector.load %arg5[%c0_8, %c0_9] : memref<32x128xf32, #tpu.memory_space<vmem>>, vector<32x128xf32>
    %cst_10 = arith.constant dense<0.000000e+00> : vector<128x128xf32>
    %31 = tpu.matmul %29, %30, %cst_10 {dimension_numbers = #tpu.dot_dimension_numbers<[1], [0], [0], [1], [0, 0, 1, 1], [], []>} : vector<128x32xf32>, vector<32x128xf32>, vector<128x128xf32> -> vector<128x128xf32>
    %c0_11 = arith.constant 0 : index
    %c0_12 = arith.constant 0 : index
    %32 = vector.load %arg4[%c0_11, %c0_12] : memref<1x128xf32, #tpu.memory_space<vmem>>, vector<1x128xf32>
    %33 = vector.shape_cast %32 : vector<1x128xf32> to vector<128xf32>
    %34 = vector.shape_cast %33 : vector<128xf32> to vector<1x128xf32>
    %35 = vector.broadcast %34 : vector<1x128xf32> to vector<128x128xf32>
    %36 = arith.addf %31, %35 : vector<128x128xf32>
    %37 = vector.extract_strided_slice %36 {offsets = [0, 0], sizes = [128, 64], strides = [1, 1]} : vector<128x128xf32> to vector<128x64xf32>
    %38 = vector.extract_strided_slice %36 {offsets = [0, 64], sizes = [128, 64], strides = [1, 1]} : vector<128x128xf32> to vector<128x64xf32>
    %39 = arith.negf %38 : vector<128x64xf32>
    %40 = math.exp %39 : vector<128x64xf32>
    %cst_13 = arith.constant 1.000000e+00 : f32
    %41 = vector.broadcast %cst_13 : f32 to vector<128x64xf32>
    %42 = arith.addf %41, %40 : vector<128x64xf32>
    %43 = arith.divf %41, %42 : vector<128x64xf32>
    %44 = arith.mulf %37, %43 : vector<128x64xf32>
    %cst_14 = arith.constant 0.000000e+00 : f32
    %45 = vector.broadcast %cst_14 : f32 to vector<8x8x64xf32>
    %c0_15 = arith.constant 0 : index
    %c0_16 = arith.constant 0 : index
    %c0_17 = arith.constant 0 : index
    %46 = vector.load %arg8[%c0_15, %c0_16, %c0_17] : memref<8x32x64xf32, #tpu.memory_space<vmem>>, vector<8x8x64xf32>
    tpu.vector_store %arg8[%c0_15, %c0_16, %c0_17], %45 {strides = array<i32>} : memref<8x32x64xf32, #tpu.memory_space<vmem>>, vector<8x8x64xf32>,
    %c0_18 = arith.constant 0 : index
    %c24 = arith.constant 24 : index
    %c0_19 = arith.constant 0 : index
    %47 = vector.load %arg8[%c0_18, %c24, %c0_19] : memref<8x32x64xf32, #tpu.memory_space<vmem>>, vector<8x8x64xf32>
    tpu.vector_store %arg8[%c0_18, %c24, %c0_19], %45 {strides = array<i32>} : memref<8x32x64xf32, #tpu.memory_space<vmem>>, vector<8x8x64xf32>,
    %48 = vector.shape_cast %44 : vector<128x64xf32> to vector<8x16x64xf32>
    %c0_20 = arith.constant 0 : index
    %c8 = arith.constant 8 : index
    %c0_21 = arith.constant 0 : index
    %49 = vector.load %arg8[%c0_20, %c8, %c0_21] : memref<8x32x64xf32, #tpu.memory_space<vmem>>, vector<8x16x64xf32>
    tpu.vector_store %arg8[%c0_20, %c8, %c0_21], %48 {strides = array<i32>} : memref<8x32x64xf32, #tpu.memory_space<vmem>>, vector<8x16x64xf32>,
    %c0_22 = arith.constant 0 : index
    %c0_23 = arith.constant 0 : index
    %c0_24 = arith.constant 0 : index
    %50 = vector.load %arg8[%c0_22, %c0_23, %c0_24] : memref<8x32x64xf32, #tpu.memory_space<vmem>>, vector<8x32x64xf32>
    %51 = vector.shape_cast %50 : vector<8x32x64xf32> to vector<256x64xf32>
    %c3 = arith.constant 3 : index
    %c0_25 = arith.constant 0 : index
    %52 = vector.load %arg3[%c3, %c0_25] : memref<10x64xf32, #tpu.memory_space<vmem>>, vector<1x64xf32>
    %53 = vector.shape_cast %52 : vector<1x64xf32> to vector<64xf32>
    %54 = vector.shape_cast %53 : vector<64xf32> to vector<1x64xf32>
    %55 = vector.broadcast %54 : vector<1x64xf32> to vector<256x64xf32>
    %56 = arith.mulf %51, %55 : vector<256x64xf32>
    %c7 = arith.constant 7 : index
    %c0_26 = arith.constant 0 : index
    %57 = vector.load %arg3[%c7, %c0_26] : memref<10x64xf32, #tpu.memory_space<vmem>>, vector<1x64xf32>
    %58 = vector.shape_cast %57 : vector<1x64xf32> to vector<64xf32>
    %59 = vector.shape_cast %58 : vector<64xf32> to vector<1x64xf32>
    %60 = vector.broadcast %59 : vector<1x64xf32> to vector<256x64xf32>
    %61 = arith.addf %56, %60 : vector<256x64xf32>
    %c255_i32 = arith.constant 255 : i32
    %62 = tpu.dynamic_rotate %51 by %c255_i32 dim 0 : vector<256x64xf32>, i32 -> vector<256x64xf32>
    %c4 = arith.constant 4 : index
    %c0_27 = arith.constant 0 : index
    %63 = vector.load %arg3[%c4, %c0_27] : memref<10x64xf32, #tpu.memory_space<vmem>>, vector<1x64xf32>
    %64 = vector.shape_cast %63 : vector<1x64xf32> to vector<64xf32>
    %65 = vector.shape_cast %64 : vector<64xf32> to vector<1x64xf32>
    %66 = vector.broadcast %65 : vector<1x64xf32> to vector<256x64xf32>
    %67 = arith.mulf %62, %66 : vector<256x64xf32>
    %68 = arith.addf %61, %67 : vector<256x64xf32>
    %c1_i32 = arith.constant 1 : i32
    %69 = tpu.dynamic_rotate %51 by %c1_i32 dim 0 : vector<256x64xf32>, i32 -> vector<256x64xf32>
    %c2 = arith.constant 2 : index
    %c0_28 = arith.constant 0 : index
    %70 = vector.load %arg3[%c2, %c0_28] : memref<10x64xf32, #tpu.memory_space<vmem>>, vector<1x64xf32>
    %71 = vector.shape_cast %70 : vector<1x64xf32> to vector<64xf32>
    %72 = vector.shape_cast %71 : vector<64xf32> to vector<1x64xf32>
    %73 = vector.broadcast %72 : vector<1x64xf32> to vector<256x64xf32>
    %74 = arith.mulf %69, %73 : vector<256x64xf32>
    %75 = arith.addf %68, %74 : vector<256x64xf32>
    %c254_i32 = arith.constant 254 : i32
    %76 = tpu.dynamic_rotate %51 by %c254_i32 dim 0 : vector<256x64xf32>, i32 -> vector<256x64xf32>
    %c5 = arith.constant 5 : index
    %c0_29 = arith.constant 0 : index
    %77 = vector.load %arg3[%c5, %c0_29] : memref<10x64xf32, #tpu.memory_space<vmem>>, vector<1x64xf32>
    %78 = vector.shape_cast %77 : vector<1x64xf32> to vector<64xf32>
    %79 = vector.shape_cast %78 : vector<64xf32> to vector<1x64xf32>
    %80 = vector.broadcast %79 : vector<1x64xf32> to vector<256x64xf32>
    %81 = arith.mulf %76, %80 : vector<256x64xf32>
    %82 = arith.addf %75, %81 : vector<256x64xf32>
    %c2_i32 = arith.constant 2 : i32
    %83 = tpu.dynamic_rotate %51 by %c2_i32 dim 0 : vector<256x64xf32>, i32 -> vector<256x64xf32>
    %c1_30 = arith.constant 1 : index
    %c0_31 = arith.constant 0 : index
    %84 = vector.load %arg3[%c1_30, %c0_31] : memref<10x64xf32, #tpu.memory_space<vmem>>, vector<1x64xf32>
    %85 = vector.shape_cast %84 : vector<1x64xf32> to vector<64xf32>
    %86 = vector.shape_cast %85 : vector<64xf32> to vector<1x64xf32>
    %87 = vector.broadcast %86 : vector<1x64xf32> to vector<256x64xf32>
    %88 = arith.mulf %83, %87 : vector<256x64xf32>
    %89 = arith.addf %82, %88 : vector<256x64xf32>
    %c253_i32 = arith.constant 253 : i32
    %90 = tpu.dynamic_rotate %51 by %c253_i32 dim 0 : vector<256x64xf32>, i32 -> vector<256x64xf32>
    %c6 = arith.constant 6 : index
    %c0_32 = arith.constant 0 : index
    %91 = vector.load %arg3[%c6, %c0_32] : memref<10x64xf32, #tpu.memory_space<vmem>>, vector<1x64xf32>
    %92 = vector.shape_cast %91 : vector<1x64xf32> to vector<64xf32>
    %93 = vector.shape_cast %92 : vector<64xf32> to vector<1x64xf32>
    %94 = vector.broadcast %93 : vector<1x64xf32> to vector<256x64xf32>
    %95 = arith.mulf %90, %94 : vector<256x64xf32>
    %96 = arith.addf %89, %95 : vector<256x64xf32>
    %c3_i32 = arith.constant 3 : i32
    %97 = tpu.dynamic_rotate %51 by %c3_i32 dim 0 : vector<256x64xf32>, i32 -> vector<256x64xf32>
    %c0_33 = arith.constant 0 : index
    %c0_34 = arith.constant 0 : index
    %98 = vector.load %arg3[%c0_33, %c0_34] : memref<10x64xf32, #tpu.memory_space<vmem>>, vector<1x64xf32>
    %99 = vector.shape_cast %98 : vector<1x64xf32> to vector<64xf32>
    %100 = vector.shape_cast %99 : vector<64xf32> to vector<1x64xf32>
    %101 = vector.broadcast %100 : vector<1x64xf32> to vector<256x64xf32>
    %102 = arith.mulf %97, %101 : vector<256x64xf32>
    %103 = arith.addf %96, %102 : vector<256x64xf32>
    %104 = vector.shape_cast %103 : vector<256x64xf32> to vector<8x32x64xf32>
    %105 = vector.extract_strided_slice %104 {offsets = [0, 8, 0], sizes = [8, 16, 64], strides = [1, 1, 1]} : vector<8x32x64xf32> to vector<8x16x64xf32>
    %c8_35 = arith.constant 8 : index
    %c0_36 = arith.constant 0 : index
    %106 = vector.load %arg3[%c8_35, %c0_36] : memref<10x64xf32, #tpu.memory_space<vmem>>, vector<1x64xf32>
    %107 = vector.shape_cast %106 : vector<1x64xf32> to vector<64xf32>
    %c9 = arith.constant 9 : index
    %c0_37 = arith.constant 0 : index
    %108 = vector.load %arg3[%c9, %c0_37] : memref<10x64xf32, #tpu.memory_space<vmem>>, vector<1x64xf32>
    %109 = vector.shape_cast %108 : vector<1x64xf32> to vector<64xf32>
    %cst_38 = arith.constant dense<0.000000e+00> : vector<8x16xf32>
    %110 = vector.multi_reduction <add>, %105, %cst_38 [2] : vector<8x16x64xf32> to vector<8x16xf32>
    %111 = vector.shape_cast %110 : vector<8x16xf32> to vector<8x16x1xf32>
    %cst_39 = arith.constant dense<0.000000e+00> : vector<8x1xf32>
    %112 = vector.multi_reduction <add>, %111, %cst_39 [1] : vector<8x16x1xf32> to vector<8x1xf32>
    %113 = vector.shape_cast %112 : vector<8x1xf32> to vector<8x1x1xf32>
    %cst_40 = arith.constant 9.765625E-4 : f32
    %114 = vector.broadcast %cst_40 : f32 to vector<8x1x1xf32>
    %115 = arith.mulf %113, %114 : vector<8x1x1xf32>
    %116 = arith.mulf %105, %105 : vector<8x16x64xf32>
    %cst_41 = arith.constant dense<0.000000e+00> : vector<8x16xf32>
    %117 = vector.multi_reduction <add>, %116, %cst_41 [2] : vector<8x16x64xf32> to vector<8x16xf32>
    %118 = vector.shape_cast %117 : vector<8x16xf32> to vector<8x16x1xf32>
    %cst_42 = arith.constant dense<0.000000e+00> : vector<8x1xf32>
    %119 = vector.multi_reduction <add>, %118, %cst_42 [1] : vector<8x16x1xf32> to vector<8x1xf32>
    %120 = vector.shape_cast %119 : vector<8x1xf32> to vector<8x1x1xf32>
    %cst_43 = arith.constant 9.765625E-4 : f32
    %121 = vector.broadcast %cst_43 : f32 to vector<8x1x1xf32>
    %122 = arith.mulf %120, %121 : vector<8x1x1xf32>
    %123 = arith.mulf %115, %115 : vector<8x1x1xf32>
    %124 = arith.subf %122, %123 : vector<8x1x1xf32>
    %cst_44 = arith.constant 9.99999974E-6 : f32
    %125 = vector.broadcast %cst_44 : f32 to vector<8x1x1xf32>
    %126 = arith.addf %124, %125 : vector<8x1x1xf32>
    %127 = math.rsqrt %126 : vector<8x1x1xf32>
    %128 = vector.shape_cast %107 : vector<64xf32> to vector<1x1x64xf32>
    %129 = vector.broadcast %127 : vector<8x1x1xf32> to vector<8x1x64xf32>
    %130 = vector.broadcast %128 : vector<1x1x64xf32> to vector<8x1x64xf32>
    %131 = arith.mulf %129, %130 : vector<8x1x64xf32>
    %132 = vector.broadcast %115 : vector<8x1x1xf32> to vector<8x1x64xf32>
    %133 = arith.mulf %132, %131 : vector<8x1x64xf32>
    %134 = vector.shape_cast %109 : vector<64xf32> to vector<1x1x64xf32>
    %135 = vector.broadcast %134 : vector<1x1x64xf32> to vector<8x1x64xf32>
    %136 = arith.subf %135, %133 : vector<8x1x64xf32>
    %137 = vector.broadcast %131 : vector<8x1x64xf32> to vector<8x16x64xf32>
    %138 = arith.mulf %105, %137 : vector<8x16x64xf32>
    %139 = vector.broadcast %136 : vector<8x1x64xf32> to vector<8x16x64xf32>
    %140 = arith.addf %138, %139 : vector<8x16x64xf32>
    %cst_45 = arith.constant 3.000000e-01 : f32
    %141 = vector.broadcast %cst_45 : f32 to vector<8x16x64xf32>
    %142 = arith.mulf %141, %140 : vector<8x16x64xf32>
    %143 = arith.maximumf %140, %142 : vector<8x16x64xf32>
    %144 = vector.shape_cast %143 : vector<8x16x64xf32> to vector<128x64xf32>
    %c0_46 = arith.constant 0 : index
    %c0_47 = arith.constant 0 : index
    %145 = vector.load %arg6[%c0_46, %c0_47] : memref<64x32xf32, #tpu.memory_space<vmem>>, vector<64x32xf32>
    %cst_48 = arith.constant dense<0.000000e+00> : vector<128x32xf32>
    %146 = tpu.matmul %144, %145, %cst_48 {dimension_numbers = #tpu.dot_dimension_numbers<[1], [0], [0], [1], [0, 0, 1, 1], [], []>} : vector<128x64xf32>, vector<64x32xf32>, vector<128x32xf32> -> vector<128x32xf32>
    %c2_49 = arith.constant 2 : index
    %c0_50 = arith.constant 0 : index
    %147 = vector.load %arg2[%c2_49, %c0_50] : memref<3x32xf32, #tpu.memory_space<vmem>>, vector<1x32xf32>
    %148 = vector.shape_cast %147 : vector<1x32xf32> to vector<32xf32>
    %149 = vector.shape_cast %148 : vector<32xf32> to vector<1x32xf32>
    %150 = vector.broadcast %149 : vector<1x32xf32> to vector<128x32xf32>
    %151 = arith.addf %146, %150 : vector<128x32xf32>
    %c0_51 = arith.constant 0 : index
    %c0_52 = arith.constant 0 : index
    %152 = vector.load %arg7[%c0_51, %c0_52] : memref<128x32xf32, #tpu.memory_space<vmem>>, vector<128x32xf32>
    tpu.vector_store %arg7[%c0_51, %c0_52], %151 {strides = array<i32>} : memref<128x32xf32, #tpu.memory_space<vmem>>, vector<128x32xf32>,
    return
  }
  func.func @transform_0(%arg0: i32) -> (i32, i32) {
    %c0_i32 = arith.constant 0 : i32
    %c0_i32_0 = arith.constant 0 : i32
    return %arg0, %c0_i32 : i32, i32
  }
  func.func @transform_1(%arg0: i32) -> (i32, i32) {
    %c0_i32 = arith.constant 0 : i32
    %c0_i32_0 = arith.constant 0 : i32
    %c0_i32_1 = arith.constant 0 : i32
    return %c0_i32, %c0_i32_0 : i32, i32
  }
  func.func @transform_2(%arg0: i32) -> (i32, i32) {
    %c0_i32 = arith.constant 0 : i32
    %c0_i32_0 = arith.constant 0 : i32
    %c0_i32_1 = arith.constant 0 : i32
    return %c0_i32, %c0_i32_0 : i32, i32
  }
  func.func @transform_3(%arg0: i32) -> (i32, i32) {
    %c0_i32 = arith.constant 0 : i32
    %c0_i32_0 = arith.constant 0 : i32
    %c0_i32_1 = arith.constant 0 : i32
    return %c0_i32, %c0_i32_0 : i32, i32
  }
  func.func @transform_4(%arg0: i32) -> (i32, i32) {
    %c0_i32 = arith.constant 0 : i32
    %c0_i32_0 = arith.constant 0 : i32
    %c0_i32_1 = arith.constant 0 : i32
    return %c0_i32, %c0_i32_0 : i32, i32
  }
  func.func @transform_5(%arg0: i32) -> (i32, i32) {
    %c0_i32 = arith.constant 0 : i32
    %c0_i32_0 = arith.constant 0 : i32
    %c0_i32_1 = arith.constant 0 : i32
    return %c0_i32, %c0_i32_0 : i32, i32
  }
  func.func @transform_6(%arg0: i32) -> (i32, i32) {
    %c0_i32 = arith.constant 0 : i32
    %c0_i32_0 = arith.constant 0 : i32
    return %arg0, %c0_i32 : i32, i32
  }
}

</mosaic_0001>

<llo_original>
// kernel: tpu_custom_call.1
$region0: #{tpu_custom_call.1}
  #allocation0 [shape = 'u32[]', space=smem, size = 0x4, offset = 0x4, fixed_abs, tag = 'smem constant byte address 0x4 - core index']
  #allocation1 [shape = 'u32[144,128]{1,0:T(1,128)}', space=vmem, size = 0x12000, scoped, tag = 'internal scratch']
  #allocation2 [shape = 'f32[8,32,64]{2,1,0:T(8,128)}', space=vmem, size = 0x20000, scoped, tag = 'scratch operand']
  %s0 = inlined_call_operand.vmem [shape: f32[256,32], index: 0, kind: input, shape index: {}]
  %s1 = inlined_call_operand.vmem [shape: f32[3,32], index: 1, kind: input, shape index: {}]
  %s2 = inlined_call_operand.vmem [shape: f32[10,64], index: 2, kind: input, shape index: {}]
  %s3 = inlined_call_operand.vmem [shape: f32[1,128], index: 3, kind: input, shape index: {}]
  %s4 = inlined_call_operand.vmem [shape: f32[32,128], index: 4, kind: input, shape index: {}]
  %s5 = inlined_call_operand.vmem [shape: f32[64,32], index: 5, kind: input, shape index: {}]
  %s6 = inlined_call_operand.vmem [shape: f32[256,32], index: 6, kind: output, shape index: {}]
  %s7 = sld [smem:[#allocation0]]
  $region57: #{tpu_custom_call.1} parent=0
    _
  %s9 = ssub.s32 1, %s7
  %s10 = scalar_select 0, %s9, %s7
  loop: start=0, step=1, limit=4
  $region2: #{tpu_custom_call.1} parent=0 // loop_pre_header
    _
  $region3: #{tpu_custom_call.1} parent=0 // loop_header
    %s12 = sphi 0, %s16
    %p13 = scmp.ge.s32.totalorder %s12, 4
    %s22 = sphi 0, %s24
    %s25 = sphi 0, %s22
    %s26 = sphi 0, %s25
    %s42 = sphi 0, %s26
    %s46 = sphi 0, %s46
    %s48 = sphi 0, %s46
    %s49 = sphi 0, %s48
    %s63 = sphi 0, %s49
    %s67 = sphi 0, %s67
    %s69 = sphi 0, %s67
    %s70 = sphi 0, %s69
    %s84 = sphi 0, %s70
    %s88 = sphi 0, %s88
    %s90 = sphi 0, %s88
    %s91 = sphi 0, %s90
    %s105 = sphi 0, %s91
    %s109 = sphi 0, %s109
    %s111 = sphi 0, %s109
    %s112 = sphi 0, %s111
    %s126 = sphi 0, %s112
    %s130 = sphi 0, %s130
    %s132 = sphi 0, %s130
    %s133 = sphi 0, %s132
    %s147 = sphi 0, %s133
    %s153 = sphi 0, %s155
    %s156 = sphi 0, %s153
    %s157 = sphi 0, %s156
    %s173 = sphi 0, %s157
  $region4: #{tpu_custom_call.1} parent=0 // loop_header_branch
    %15 = sbr.rel (%p13) target = $region8
  $region5: #{tpu_custom_call.1} parent=0 // loop_body
    %s17 = ssub.s32 %s12, 1
    %s18 = ssub.s32 %s12, 2
    %s19 = sadd.s32 %s12, 1
    %s20 = ssub.s32 %s12, %s19
    %p21 = scmp.eq.s32.totalorder %s20, 0
    %s23 = sadd.s32 %s22, 1
    %s24 = scalar_select %p21, %s22, %s23
    %p27 = pneg %p21
    %p28 = scmp.eq.s32.totalorder %s12, 1
    %p29 = por %p27, %p28
    %p30 = scmp.ne.s32.totalorder %s22, %s25
    %p31 = scmp.eq.s32.totalorder %s12, 0
    %p32 = por %p30, %p31
    %p33 = scmp.ne.s32.totalorder %s22, %s25
    %p34 = scmp.eq.s32.totalorder %s17, 1
    %p35 = por %p33, %p34
    %p36 = scmp.ne.s32.totalorder %s25, %s26
    %p37 = scmp.eq.s32.totalorder %s17, 0
    %p38 = por %p36, %p37
    %p39 = scmp.ne.s32.totalorder %s25, %s26
    %p40 = scmp.eq.s32.totalorder %s18, 1
    %p41 = por %p39, %p40
    %p43 = scmp.ne.s32.totalorder %s26, %s42
    %p44 = scmp.eq.s32.totalorder %s18, 0
    %p45 = por %p43, %p44
    %s47 = sadd.s32 %s46, 1
    %p50 = scmp.eq.s32.totalorder %s12, 1
    %p51 = scmp.ne.s32.totalorder %s46, %s48
    %p52 = scmp.eq.s32.totalorder %s12, 0
    %p53 = por %p51, %p52
    %p54 = scmp.ne.s32.totalorder %s46, %s48
    %p55 = scmp.eq.s32.totalorder %s17, 1
    %p56 = por %p54, %p55
    %p57 = scmp.ne.s32.totalorder %s48, %s49
    %p58 = scmp.eq.s32.totalorder %s17, 0
    %p59 = por %p57, %p58
    %p60 = scmp.ne.s32.totalorder %s48, %s49
    %p61 = scmp.eq.s32.totalorder %s18, 1
    %p62 = por %p60, %p61
    %p64 = scmp.ne.s32.totalorder %s49, %s63
    %p65 = scmp.eq.s32.totalorder %s18, 0
    %p66 = por %p64, %p65
    %s68 = sadd.s32 %s67, 1
    %p71 = scmp.eq.s32.totalorder %s12, 1
    %p72 = scmp.ne.s32.totalorder %s67, %s69
    %p73 = scmp.eq.s32.totalorder %s12, 0
    %p74 = por %p72, %p73
    %p75 = scmp.ne.s32.totalorder %s67, %s69
    %p76 = scmp.eq.s32.totalorder %s17, 1
    %p77 = por %p75, %p76
    %p78 = scmp.ne.s32.totalorder %s69, %s70
    %p79 = scmp.eq.s32.totalorder %s17, 0
    %p80 = por %p78, %p79
    %p81 = scmp.ne.s32.totalorder %s69, %s70
    %p82 = scmp.eq.s32.totalorder %s18, 1
    %p83 = por %p81, %p82
    %p85 = scmp.ne.s32.totalorder %s70, %s84
    %p86 = scmp.eq.s32.totalorder %s18, 0
    %p87 = por %p85, %p86
    %s89 = sadd.s32 %s88, 1
    %p92 = scmp.eq.s32.totalorder %s12, 1
    %p93 = scmp.ne.s32.totalorder %s88, %s90
    %p94 = scmp.eq.s32.totalorder %s12, 0
    %p95 = por %p93, %p94
    %p96 = scmp.ne.s32.totalorder %s88, %s90
    %p97 = scmp.eq.s32.totalorder %s17, 1
    %p98 = por %p96, %p97
    %p99 = scmp.ne.s32.totalorder %s90, %s91
    %p100 = scmp.eq.s32.totalorder %s17, 0
    %p101 = por %p99, %p100
    %p102 = scmp.ne.s32.totalorder %s90, %s91
    %p103 = scmp.eq.s32.totalorder %s18, 1
    %p104 = por %p102, %p103
    %p106 = scmp.ne.s32.totalorder %s91, %s105
    %p107 = scmp.eq.s32.totalorder %s18, 0
    %p108 = por %p106, %p107
    %s110 = sadd.s32 %s109, 1
    %p113 = scmp.eq.s32.totalorder %s12, 1
    %p114 = scmp.ne.s32.totalorder %s109, %s111
    %p115 = scmp.eq.s32.totalorder %s12, 0
    %p116 = por %p114, %p115
    %p117 = scmp.ne.s32.totalorder %s109, %s111
    %p118 = scmp.eq.s32.totalorder %s17, 1
    %p119 = por %p117, %p118
    %p120 = scmp.ne.s32.totalorder %s111, %s112
    %p121 = scmp.eq.s32.totalorder %s17, 0
    %p122 = por %p120, %p121
    %p123 = scmp.ne.s32.totalorder %s111, %s112
    %p124 = scmp.eq.s32.totalorder %s18, 1
    %p125 = por %p123, %p124
    %p127 = scmp.ne.s32.totalorder %s112, %s126
    %p128 = scmp.eq.s32.totalorder %s18, 0
    %p129 = por %p127, %p128
    %s131 = sadd.s32 %s130, 1
    %p134 = scmp.eq.s32.totalorder %s12, 1
    %p135 = scmp.ne.s32.totalorder %s130, %s132
    %p136 = scmp.eq.s32.totalorder %s12, 0
    %p137 = por %p135, %p136
    %p138 = scmp.ne.s32.totalorder %s130, %s132
    %p139 = scmp.eq.s32.totalorder %s17, 1
    %p140 = por %p138, %p139
    %p141 = scmp.ne.s32.totalorder %s132, %s133
    %p142 = scmp.eq.s32.totalorder %s17, 0
    %p143 = por %p141, %p142
    %p144 = scmp.ne.s32.totalorder %s132, %s133
    %p145 = scmp.eq.s32.totalorder %s18, 1
    %p146 = por %p144, %p145
    %p148 = scmp.ne.s32.totalorder %s133, %s147
    %p149 = scmp.eq.s32.totalorder %s18, 0
    %p150 = por %p148, %p149
    %s151 = ssub.s32 %s12, %s19
    %p152 = scmp.eq.s32.totalorder %s151, 0
    %s154 = sadd.s32 %s153, 1
    %s155 = scalar_select %p152, %s153, %s154
    %p158 = pneg %p152
    %p159 = scmp.eq.s32.totalorder %s12, 1
    %p160 = por %p158, %p159
    %p161 = scmp.ne.s32.totalorder %s153, %s156
    %p162 = scmp.eq.s32.totalorder %s12, 0
    %p163 = por %p161, %p162
    %p164 = scmp.ne.s32.totalorder %s153, %s156
    %p165 = scmp.eq.s32.totalorder %s17, 1
    %p166 = por %p164, %p165
    %p167 = scmp.ne.s32.totalorder %s156, %s157
    %p168 = scmp.eq.s32.totalorder %s17, 0
    %p169 = por %p167, %p168
    %p170 = scmp.ne.s32.totalorder %s156, %s157
    %p171 = scmp.eq.s32.totalorder %s18, 1
    %p172 = por %p170, %p171
    %p174 = scmp.ne.s32.totalorder %s157, %s173
    %p175 = scmp.eq.s32.totalorder %s18, 0
    %p176 = por %p174, %p175
    %p177 = scmp.le.s32.totalorder 1, %s12
    %p178 = scmp.lt.s32.totalorder %s12, 3
    %p179 = pnand %p177, %p178
    %p180 = pneg %p179
    // Predicated region
    $region9: #{tpu_custom_call.1} parent=5 // pred_check
      _
    $region10: #{tpu_custom_call.1} parent=5 // pred_check_branch
      %182 = sbr.rel (%p179) target = $region12
    $region11: #{tpu_custom_call.1} parent=5 // pred_region
      %s183 = ssub.s32 %s12, 1
      // Predicated region
      $region13: #{tpu_custom_call.1} parent=11 // pred_check
        %p184 = pneg %p59
      $region14: #{tpu_custom_call.1} parent=11 // pred_check_branch
        %186 = sbr.rel (%p184) target = $region16
      $region15: #{tpu_custom_call.1} parent=11 // pred_region
        _
      $region16: #{tpu_custom_call.1} parent=11 // pred_fallthru
        _
      // Predicated region
      $region17: #{tpu_custom_call.1} parent=11 // pred_check
        %p187 = pneg %p80
      $region18: #{tpu_custom_call.1} parent=11 // pred_check_branch
        %189 = sbr.rel (%p187) target = $region20
      $region19: #{tpu_custom_call.1} parent=11 // pred_region
        _
      $region20: #{tpu_custom_call.1} parent=11 // pred_fallthru
        _
      // Predicated region
      $region21: #{tpu_custom_call.1} parent=11 // pred_check
        %p190 = pneg %p101
      $region22: #{tpu_custom_call.1} parent=11 // pred_check_branch
        %192 = sbr.rel (%p190) target = $region24
      $region23: #{tpu_custom_call.1} parent=11 // pred_region
        _
      $region24: #{tpu_custom_call.1} parent=11 // pred_fallthru
        _
      // Predicated region
      $region25: #{tpu_custom_call.1} parent=11 // pred_check
        %p193 = pneg %p122
      $region26: #{tpu_custom_call.1} parent=11 // pred_check_branch
        %195 = sbr.rel (%p193) target = $region28
      $region27: #{tpu_custom_call.1} parent=11 // pred_region
        _
      $region28: #{tpu_custom_call.1} parent=11 // pred_fallthru
        _
      // Predicated region
      $region29: #{tpu_custom_call.1} parent=11 // pred_check
        %p196 = pneg %p143
      $region30: #{tpu_custom_call.1} parent=11 // pred_check_branch
        %198 = sbr.rel (%p196) target = $region32
      $region31: #{tpu_custom_call.1} parent=11 // pred_region
        _
      $region32: #{tpu_custom_call.1} parent=11 // pred_fallthru
        _
    $region12: #{tpu_custom_call.1} parent=5 // pred_fallthru
      _
    %p199 = scmp.lt.s32.totalorder %s12, 2
    // Predicated region
    $region33: #{tpu_custom_call.1} parent=5 // pred_check
      %p200 = pneg %p199
    $region34: #{tpu_custom_call.1} parent=5 // pred_check_branch
      %202 = sbr.rel (%p200) target = $region36
    $region35: #{tpu_custom_call.1} parent=5 // pred_region
      // Predicated region
      $region37: #{tpu_custom_call.1} parent=35 // pred_check
        %p203 = pneg %p32
      $region38: #{tpu_custom_call.1} parent=35 // pred_check_branch
        %205 = sbr.rel (%p203) target = $region40
      $region39: #{tpu_custom_call.1} parent=35 // pred_region
        %s206 = smul.u32 16, %s12
        %p207 = scmp.lt.s32.totalorder %s206, 31
        %s208 = scalar_select %p207, %s206, 31
        %s209 = smul.addr %s208, 8
        %s210 = scalar_lea.vmem %s0, %s209
        %s211 = smul.u32 16, %s12
      $region40: #{tpu_custom_call.1} parent=35 // pred_fallthru
        _
    $region36: #{tpu_custom_call.1} parent=5 // pred_fallthru
      _
    %p212 = scmp.le.s32.totalorder 1, %s12
    %p213 = scmp.lt.s32.totalorder %s12, 3
    %p214 = pnand %p212, %p213
    %p215 = pneg %p214
    // Predicated region
    $region41: #{tpu_custom_call.1} parent=5 // pred_check
      _
    $region42: #{tpu_custom_call.1} parent=5 // pred_check_branch
      %217 = sbr.rel (%p214) target = $region44
    $region43: #{tpu_custom_call.1} parent=5 // pred_region
      %s218 = ssub.s32 %s12, 1
      %s219 = smul.u32 16, %s17
      %p220 = scmp.lt.s32.totalorder %s219, 31
      %s221 = scalar_select %p220, %s219, 31
      %s222 = smul.addr %s221, 8
      %s223 = scalar_lea.vmem %s0, %s222
      %p224 = pneg %p38
      %p225 = pneg %p35
      %p226 = pneg %p59
      %p227 = pneg %p56
      %p228 = pneg %p80
      %p229 = pneg %p77
      %p230 = pneg %p101
      %p231 = pneg %p98
      %p232 = pneg %p122
      %p233 = pneg %p119
      %p234 = pneg %p143
      %p235 = pneg %p140
      %p236 = pneg %p169
      %p237 = pneg %p166
      %s238 = smul.u32 16, %s17
      %p239 = scmp.lt.s32.totalorder %s238, 31
      %s240 = scalar_select %p239, %s238, 31
      %s241 = smul.addr %s240, 8
      %s242 = scalar_lea.vmem %s6, %s241
      %s243 = smul.u32 16, %s17
      %p244 = scmp.lt.s32.totalorder %s243, 31
      %s245 = scalar_select %p244, %s243, 31
      %s246 = smul.addr %s245, 8
      %s247 = scalar_lea.vmem %s0, %s246
      %s248 = smul.u32 16, %s17
      %s249 = smul.u32 16, %s17
      %p250 = scmp.lt.s32.totalorder %s249, 31
      %s251 = scalar_select %p250, %s249, 31
      %s252 = smul.addr %s251, 8
      %s253 = scalar_lea.vmem %s6, %s252
      %s254 = smul.u32 16, %s17
      %v255 = vld [vmem:[%s247] sm:$0xff]
      %v256 = vld [vmem:[%s247 + $0x8] sm:$0xff]
      %v257 = vld [vmem:[%s247 + $0x10] sm:$0xff]
      %v258 = vld [vmem:[%s247 + $0x18] sm:$0xff]
      %v259 = vld [vmem:[%s247 + $0x20] sm:$0xff]
      %v260 = vld [vmem:[%s247 + $0x28] sm:$0xff]
      %v261 = vld [vmem:[%s247 + $0x30] sm:$0xff]
      %v262 = vld [vmem:[%s247 + $0x38] sm:$0xff]
      %v263 = vld [vmem:[%s247 + $0x40] sm:$0xff]
      %v264 = vld [vmem:[%s247 + $0x48] sm:$0xff]
      %v265 = vld [vmem:[%s247 + $0x50] sm:$0xff]
      %v266 = vld [vmem:[%s247 + $0x58] sm:$0xff]
      %v267 = vld [vmem:[%s247 + $0x60] sm:$0xff]
      %v268 = vld [vmem:[%s247 + $0x68] sm:$0xff]
      %v269 = vld [vmem:[%s247 + $0x70] sm:$0xff]
      %v270 = vld [vmem:[%s247 + $0x78] sm:$0xff]
      %v271 = vld [vmem:[%s1] sm:$0x1]
      %v272 = vld [vmem:[%s1 + $0x1] sm:$0x1]
      %vm273 = vcmask 261120
      %v274 = vsel %vm273, %v255, 0.0
      %275 = vadd.xlane.f32.xlu0 %v274
      %v276 = vpop.xlane.xlu0 %275
      %v277 = vsel %vm273, %v256, 0.0
      %278 = vadd.xlane.f32.xlu0 %v277
      %v279 = vpop.xlane.xlu0 %278
      %v280 = vsel %vm273, %v257, 0.0
      %281 = vadd.xlane.f32.xlu0 %v280
      %v282 = vpop.xlane.xlu0 %281
      %v283 = vsel %vm273, %v258, 0.0
      %284 = vadd.xlane.f32.xlu0 %v283
      %v285 = vpop.xlane.xlu0 %284
      %v286 = vsel %vm273, %v259, 0.0
      %287 = vadd.xlane.f32.xlu0 %v286
      %v288 = vpop.xlane.xlu0 %287
      %v289 = vsel %vm273, %v260, 0.0
      %290 = vadd.xlane.f32.xlu0 %v289
      %v291 = vpop.xlane.xlu0 %290
      %v292 = vsel %vm273, %v261, 0.0
      %293 = vadd.xlane.f32.xlu0 %v292
      %v294 = vpop.xlane.xlu0 %293
      %v295 = vsel %vm273, %v262, 0.0
      %296 = vadd.xlane.f32.xlu0 %v295
      %v297 = vpop.xlane.xlu0 %296
      %v298 = vsel %vm273, %v263, 0.0
      %299 = vadd.xlane.f32.xlu0 %v298
      %v300 = vpop.xlane.xlu0 %299
      %v301 = vsel %vm273, %v264, 0.0
      %302 = vadd.xlane.f32.xlu0 %v301
      %v303 = vpop.xlane.xlu0 %302
      %v304 = vsel %vm273, %v265, 0.0
      %305 = vadd.xlane.f32.xlu0 %v304
      %v306 = vpop.xlane.xlu0 %305
      %v307 = vsel %vm273, %v266, 0.0
      %308 = vadd.xlane.f32.xlu0 %v307
      %v309 = vpop.xlane.xlu0 %308
      %v310 = vsel %vm273, %v267, 0.0
      %311 = vadd.xlane.f32.xlu0 %v310
      %v312 = vpop.xlane.xlu0 %311
      %v313 = vsel %vm273, %v268, 0.0
      %314 = vadd.xlane.f32.xlu0 %v313
      %v315 = vpop.xlane.xlu0 %314
      %v316 = vsel %vm273, %v269, 0.0
      %317 = vadd.xlane.f32.xlu0 %v316
      %v318 = vpop.xlane.xlu0 %317
      %v319 = vsel %vm273, %v270, 0.0
      %320 = vadd.xlane.f32.xlu0 %v319
      %v321 = vpop.xlane.xlu0 %320
      %v322 = vrcp.pop 32.0
      %v323 = vmul.f32 %v276, %v322
      %v324 = vmul.f32 %v279, %v322
      %v325 = vmul.f32 %v282, %v322
      %v326 = vmul.f32 %v285, %v322
      %v327 = vmul.f32 %v288, %v322
      %v328 = vmul.f32 %v291, %v322
      %v329 = vmul.f32 %v294, %v322
      %v330 = vmul.f32 %v297, %v322
      %v331 = vmul.f32 %v300, %v322
      %v332 = vmul.f32 %v303, %v322
      %v333 = vmul.f32 %v306, %v322
      %v334 = vmul.f32 %v309, %v322
      %v335 = vmul.f32 %v312, %v322
      %v336 = vmul.f32 %v315, %v322
      %v337 = vmul.f32 %v318, %v322
      %v338 = vmul.f32 %v321, %v322
      %v339 = vmul.f32 %v255, %v255
      %v340 = vmul.f32 %v256, %v256
      %v341 = vmul.f32 %v257, %v257
      %v342 = vmul.f32 %v258, %v258
      %v343 = vmul.f32 %v259, %v259
      %v344 = vmul.f32 %v260, %v260
      %v345 = vmul.f32 %v261, %v261
      %v346 = vmul.f32 %v262, %v262
      %v347 = vmul.f32 %v263, %v263
      %v348 = vmul.f32 %v264, %v264
      %v349 = vmul.f32 %v265, %v265
      %v350 = vmul.f32 %v266, %v266
      %v351 = vmul.f32 %v267, %v267
      %v352 = vmul.f32 %v268, %v268
      %v353 = vmul.f32 %v269, %v269
      %v354 = vmul.f32 %v270, %v270
      %v355 = vsel %vm273, %v339, 0.0
      %356 = vadd.xlane.f32.xlu0 %v355
      %v357 = vpop.xlane.xlu0 %356
      %v358 = vsel %vm273, %v340, 0.0
      %359 = vadd.xlane.f32.xlu0 %v358
      %v360 = vpop.xlane.xlu0 %359
      %v361 = vsel %vm273, %v341, 0.0
      %362 = vadd.xlane.f32.xlu0 %v361
      %v363 = vpop.xlane.xlu0 %362
      %v364 = vsel %vm273, %v342, 0.0
      %365 = vadd.xlane.f32.xlu0 %v364
      %v366 = vpop.xlane.xlu0 %365
      %v367 = vsel %vm273, %v343, 0.0
      %368 = vadd.xlane.f32.xlu0 %v367
      %v369 = vpop.xlane.xlu0 %368
      %v370 = vsel %vm273, %v344, 0.0
      %371 = vadd.xlane.f32.xlu0 %v370
      %v372 = vpop.xlane.xlu0 %371
      %v373 = vsel %vm273, %v345, 0.0
      %374 = vadd.xlane.f32.xlu0 %v373
      %v375 = vpop.xlane.xlu0 %374
      %v376 = vsel %vm273, %v346, 0.0
      %377 = vadd.xlane.f32.xlu0 %v376
      %v378 = vpop.xlane.xlu0 %377
      %v379 = vsel %vm273, %v347, 0.0
      %380 = vadd.xlane.f32.xlu0 %v379
      %v381 = vpop.xlane.xlu0 %380
      %v382 = vsel %vm273, %v348, 0.0
      %383 = vadd.xlane.f32.xlu0 %v382
      %v384 = vpop.xlane.xlu0 %383
      %v385 = vsel %vm273, %v349, 0.0
      %386 = vadd.xlane.f32.xlu0 %v385
      %v387 = vpop.xlane.xlu0 %386
      %v388 = vsel %vm273, %v350, 0.0
      %389 = vadd.xlane.f32.xlu0 %v388
      %v390 = vpop.xlane.xlu0 %389
      %v391 = vsel %vm273, %v351, 0.0
      %392 = vadd.xlane.f32.xlu0 %v391
      %v393 = vpop.xlane.xlu0 %392
      %v394 = vsel %vm273, %v352, 0.0
      %395 = vadd.xlane.f32.xlu0 %v394
      %v396 = vpop.xlane.xlu0 %395
      %v397 = vsel %vm273, %v353, 0.0
      %398 = vadd.xlane.f32.xlu0 %v397
      %v399 = vpop.xlane.xlu0 %398
      %v400 = vsel %vm273, %v354, 0.0
      %401 = vadd.xlane.f32.xlu0 %v400
      %v402 = vpop.xlane.xlu0 %401
      %v403 = vmul.f32 %v357, %v322
      %v404 = vmul.f32 %v360, %v322
      %v405 = vmul.f32 %v363, %v322
      %v406 = vmul.f32 %v366, %v322
      %v407 = vmul.f32 %v369, %v322
      %v408 = vmul.f32 %v372, %v322
      %v409 = vmul.f32 %v375, %v322
      %v410 = vmul.f32 %v378, %v322
      %v411 = vmul.f32 %v381, %v322
      %v412 = vmul.f32 %v384, %v322
      %v413 = vmul.f32 %v387, %v322
      %v414 = vmul.f32 %v390, %v322
      %v415 = vmul.f32 %v393, %v322
      %v416 = vmul.f32 %v396, %v322
      %v417 = vmul.f32 %v399, %v322
      %v418 = vmul.f32 %v402, %v322
      %v419 = vmul.f32 %v323, %v323
      %v420 = vmul.f32 %v324, %v324
      %v421 = vmul.f32 %v325, %v325
      %v422 = vmul.f32 %v326, %v326
      %v423 = vmul.f32 %v327, %v327
      %v424 = vmul.f32 %v328, %v328
      %v425 = vmul.f32 %v329, %v329
      %v426 = vmul.f32 %v330, %v330
      %v427 = vmul.f32 %v331, %v331
      %v428 = vmul.f32 %v332, %v332
      %v429 = vmul.f32 %v333, %v333
      %v430 = vmul.f32 %v334, %v334
      %v431 = vmul.f32 %v335, %v335
      %v432 = vmul.f32 %v336, %v336
      %v433 = vmul.f32 %v337, %v337
      %v434 = vmul.f32 %v338, %v338
      %v435 = vsub.f32 %v403, %v419
      %v436 = vsub.f32 %v404, %v420
      %v437 = vsub.f32 %v405, %v421
      %v438 = vsub.f32 %v406, %v422
      %v439 = vsub.f32 %v407, %v423
      %v440 = vsub.f32 %v408, %v424
      %v441 = vsub.f32 %v409, %v425
      %v442 = vsub.f32 %v410, %v426
      %v443 = vsub.f32 %v411, %v427
      %v444 = vsub.f32 %v412, %v428
      %v445 = vsub.f32 %v413, %v429
      %v446 = vsub.f32 %v414, %v430
      %v447 = vsub.f32 %v415, %v431
      %v448 = vsub.f32 %v416, %v432
      %v449 = vsub.f32 %v417, %v433
      %v450 = vsub.f32 %v418, %v434
      %v451 = vadd.f32 %v435, 1e-05
      %v452 = vadd.f32 %v436, 1e-05
      %v453 = vadd.f32 %v437, 1e-05
      %v454 = vadd.f32 %v438, 1e-05
      %v455 = vadd.f32 %v439, 1e-05
      %v456 = vadd.f32 %v440, 1e-05
      %v457 = vadd.f32 %v441, 1e-05
      %v458 = vadd.f32 %v442, 1e-05
      %v459 = vadd.f32 %v443, 1e-05
      %v460 = vadd.f32 %v444, 1e-05
      %v461 = vadd.f32 %v445, 1e-05
      %v462 = vadd.f32 %v446, 1e-05
      %v463 = vadd.f32 %v447, 1e-05
      %v464 = vadd.f32 %v448, 1e-05
      %v465 = vadd.f32 %v449, 1e-05
      %v466 = vadd.f32 %v450, 1e-05
      %v467 = vrsqrt.pop %v451
      %v468 = vrsqrt.pop %v452
      %v469 = vrsqrt.pop %v453
      %v470 = vrsqrt.pop %v454
      %v471 = vrsqrt.pop %v455
      %v472 = vrsqrt.pop %v456
      %v473 = vrsqrt.pop %v457
      %v474 = vrsqrt.pop %v458
      %v475 = vrsqrt.pop %v459
      %v476 = vrsqrt.pop %v460
      %v477 = vrsqrt.pop %v461
      %v478 = vrsqrt.pop %v462
      %v479 = vrsqrt.pop %v463
      %v480 = vrsqrt.pop %v464
      %v481 = vrsqrt.pop %v465
      %v482 = vrsqrt.pop %v466
      %v483 = vlaneseq
      %v484 = vshrl.u32 %v483, 7
      %v485 = vsub.s32 0, %v484
      %v486 = vrot.slane %v271, %v485
      %v487 = vmul.f32 %v467, %v486
      %v488 = vmul.f32 %v468, %v486
      %v489 = vmul.f32 %v469, %v486
      %v490 = vmul.f32 %v470, %v486
      %v491 = vmul.f32 %v471, %v486
      %v492 = vmul.f32 %v472, %v486
      %v493 = vmul.f32 %v473, %v486
      %v494 = vmul.f32 %v474, %v486
      %v495 = vmul.f32 %v475, %v486
      %v496 = vmul.f32 %v476, %v486
      %v497 = vmul.f32 %v477, %v486
      %v498 = vmul.f32 %v478, %v486
      %v499 = vmul.f32 %v479, %v486
      %v500 = vmul.f32 %v480, %v486
      %v501 = vmul.f32 %v481, %v486
      %v502 = vmul.f32 %v482, %v486
      %v503 = vmul.f32 %v255, %v487
      %v504 = vmul.f32 %v256, %v488
      %v505 = vmul.f32 %v257, %v489
      %v506 = vmul.f32 %v258, %v490
      %v507 = vmul.f32 %v259, %v491
      %v508 = vmul.f32 %v260, %v492
      %v509 = vmul.f32 %v261, %v493
      %v510 = vmul.f32 %v262, %v494
      %v511 = vmul.f32 %v263, %v495
      %v512 = vmul.f32 %v264, %v496
      %v513 = vmul.f32 %v265, %v497
      %v514 = vmul.f32 %v266, %v498
      %v515 = vmul.f32 %v267, %v499
      %v516 = vmul.f32 %v268, %v500
      %v517 = vmul.f32 %v269, %v501
      %v518 = vmul.f32 %v270, %v502
      %v519 = vmul.f32 %v323, %v487
      %v520 = vmul.f32 %v324, %v488
      %v521 = vmul.f32 %v325, %v489
      %v522 = vmul.f32 %v326, %v490
      %v523 = vmul.f32 %v327, %v491
      %v524 = vmul.f32 %v328, %v492
      %v525 = vmul.f32 %v329, %v493
      %v526 = vmul.f32 %v330, %v494
      %v527 = vmul.f32 %v331, %v495
      %v528 = vmul.f32 %v332, %v496
      %v529 = vmul.f32 %v333, %v497
      %v530 = vmul.f32 %v334, %v498
      %v531 = vmul.f32 %v335, %v499
      %v532 = vmul.f32 %v336, %v500
      %v533 = vmul.f32 %v337, %v501
      %v534 = vmul.f32 %v338, %v502
      %v535 = vlaneseq
      %v536 = vshrl.u32 %v535, 7
      %v537 = vsub.s32 0, %v536
      %v538 = vrot.slane %v272, %v537
      %v539 = vsub.f32 %v538, %v519
      %v540 = vsub.f32 %v538, %v520
      %v541 = vsub.f32 %v538, %v521
      %v542 = vsub.f32 %v538, %v522
      %v543 = vsub.f32 %v538, %v523
      %v544 = vsub.f32 %v538, %v524
      %v545 = vsub.f32 %v538, %v525
      %v546 = vsub.f32 %v538, %v526
      %v547 = vsub.f32 %v538, %v527
      %v548 = vsub.f32 %v538, %v528
      %v549 = vsub.f32 %v538, %v529
      %v550 = vsub.f32 %v538, %v530
      %v551 = vsub.f32 %v538, %v531
      %v552 = vsub.f32 %v538, %v532
      %v553 = vsub.f32 %v538, %v533
      %v554 = vsub.f32 %v538, %v534
      %v555 = vadd.f32 %v503, %v539
      %v556 = vadd.f32 %v504, %v540
      %v557 = vadd.f32 %v505, %v541
      %v558 = vadd.f32 %v506, %v542
      %v559 = vadd.f32 %v507, %v543
      %v560 = vadd.f32 %v508, %v544
      %v561 = vadd.f32 %v509, %v545
      %v562 = vadd.f32 %v510, %v546
      %v563 = vadd.f32 %v511, %v547
      %v564 = vadd.f32 %v512, %v548
      %v565 = vadd.f32 %v513, %v549
      %v566 = vadd.f32 %v514, %v550
      %v567 = vadd.f32 %v515, %v551
      %v568 = vadd.f32 %v516, %v552
      %v569 = vadd.f32 %v517, %v553
      %v570 = vadd.f32 %v518, %v554
      %v571 = vld [vmem:[%s4] sm:$0xff]
      %v572 = vld [vmem:[%s4 + $0x8] sm:$0xff]
      %v573 = vld [vmem:[%s4 + $0x10] sm:$0xff]
      %v574 = vld [vmem:[%s4 + $0x18] sm:$0xff]
      %v575 = vld [vmem:[%s3] sm:$0x1]
      %v577 = vlaneseq
      %v578 = vshrl.u32 %v577, 7
      %v579 = vsub.s32 0, %v578
      %v580 = vrot.slane %v575, %v579
      %v583 = vsel %vm273, %v555, 0
      %v586 = vsel %vm273, %v556, 0
      %v589 = vsel %vm273, %v557, 0
      %v592 = vsel %vm273, %v558, 0
      %v595 = vsel %vm273, %v559, 0
      %v598 = vsel %vm273, %v560, 0
      %v601 = vsel %vm273, %v561, 0
      %v604 = vsel %vm273, %v562, 0
      %v607 = vsel %vm273, %v563, 0
      %v610 = vsel %vm273, %v564, 0
      %v613 = vsel %vm273, %v565, 0
      %v616 = vsel %vm273, %v566, 0
      %v619 = vsel %vm273, %v567, 0
      %v622 = vsel %vm273, %v568, 0
      %v625 = vsel %vm273, %v569, 0
      %v628 = vsel %vm273, %v570, 0
      %630 = vmatprep.subr.mxu0 0.0
      %631 = vmatpush1.msra.mxu0 %v571
      %632 = vmatprep.subr.mxu0 0.0
      %633 = vmatpush1.msra.mxu0 %v572
      %634 = vmatprep.subr.mxu0 0.0
      %635 = vmatpush1.msra.mxu0 %v573
      %636 = vmatprep.subr.mxu0 0.0
      %637 = vmatpush1.msra.mxu0 %v574
      %638 = vmatprep.subr.mxu0 0.0
      %639 = vmatpush1.msra.mxu0 0.0
      %640 = vmatprep.subr.mxu0 0.0
      %641 = vmatpush1.msra.mxu0 0.0
      %642 = vmatprep.subr.mxu0 0.0
      %643 = vmatpush1.msra.mxu0 0.0
      %644 = vmatprep.subr.mxu0 0.0
      %645 = vmatpush1.msra.mxu0 0.0
      %646 = vmatprep.subr.mxu0 0.0
      %647 = vmatpush1.msra.mxu0 0.0
      %648 = vmatprep.subr.mxu0 0.0
      %649 = vmatpush1.msra.mxu0 0.0
      %650 = vmatprep.subr.mxu0 0.0
      %651 = vmatpush1.msra.mxu0 0.0
      %652 = vmatprep.subr.mxu0 0.0
      %653 = vmatpush1.msra.mxu0 0.0
      %654 = vmatprep.subr.mxu0 0.0
      %655 = vmatpush1.msra.mxu0 0.0
      %656 = vmatprep.subr.mxu0 0.0
      %657 = vmatpush1.msra.mxu0 0.0
      %658 = vmatprep.subr.mxu0 0.0
      %659 = vmatpush1.msra.mxu0 0.0
      %660 = vmatprep.subr.mxu0 0.0
      %661 = vmatpush1.msra.mxu0 0.0
      %662 = vmatprep.subr.mxu0 0.0
      %663 = vmatpush1.msra.mxu0 0.0
      %664 = vmatprep.subr.mxu0 0.0
      %665 = vmatpush1.msra.mxu0 0.0
      %666 = vmatprep.subr.mxu0 0.0
      %667 = vmatpush1.msra.mxu0 0.0
      %668 = vmatprep.subr.mxu0 0.0
      %669 = vmatpush1.msra.mxu0 0.0
      %670 = vmatprep.subr.mxu0 0.0
      %671 = vmatpush1.msra.mxu0 0.0
      %672 = vmatprep.subr.mxu0 0.0
      %673 = vmatpush1.msra.mxu0 0.0
      %674 = vmatprep.subr.mxu0 0.0
      %675 = vmatpush1.msra.mxu0 0.0
      %676 = vmatprep.subr.mxu0 0.0
      %677 = vmatpush1.msra.mxu0 0.0
      %678 = vmatprep.subr.mxu0 0.0
      %679 = vmatpush1.msra.mxu0 0.0
      %680 = vmatprep.subr.mxu0 0.0
      %681 = vmatpush1.msra.mxu0 0.0
      %682 = vmatprep.subr.mxu0 0.0
      %683 = vmatpush1.msra.mxu0 0.0
      %684 = vmatprep.subr.mxu0 0.0
      %685 = vmatpush1.msra.mxu0 0.0
      %686 = vmatprep.subr.mxu0 0.0
      %687 = vmatpush1.msra.mxu0 0.0
      %688 = vmatprep.subr.mxu0 0.0
      %689 = vmatpush1.msra.mxu0 0.0
      %690 = vmatprep.subr.mxu0 0.0
      %691 = vmatpush1.msra.mxu0 0.0
      %692 = vmatprep.subr.mxu0 0.0
      %693 = vmatpush1.msra.mxu0 0.0
      %694 = vmatprep.mubr.f32.mxu0 0.0
      %695 = vmatmul.mubr.f32.gmra.mrb[0].mxu0 %v583
      %v696 = vpop.f32.mrb[0].mxu0
      %v697 = vadd.f32 %v580, %v696
      %v698 = vpop.f32.mrb[0].mxu0
      %699 = vmatprep.mubr.f32.mxu0 0.0
      %700 = vmatmul.mubr.f32.gmra.mrb[0].mxu0 %v586
      %v701 = vpop.f32.mrb[0].mxu0
      %v702 = vadd.f32 %v580, %v701
      %v703 = vpop.f32.mrb[0].mxu0
      %704 = vmatprep.mubr.f32.mxu0 0.0
      %705 = vmatmul.mubr.f32.gmra.mrb[0].mxu0 %v589
      %v706 = vpop.f32.mrb[0].mxu0
      %v707 = vadd.f32 %v580, %v706
      %v708 = vpop.f32.mrb[0].mxu0
      %709 = vmatprep.mubr.f32.mxu0 0.0
      %710 = vmatmul.mubr.f32.gmra.mrb[0].mxu0 %v592
      %v711 = vpop.f32.mrb[0].mxu0
      %v712 = vadd.f32 %v580, %v711
      %v713 = vpop.f32.mrb[0].mxu0
      %714 = vmatprep.mubr.f32.mxu0 0.0
      %715 = vmatmul.mubr.f32.gmra.mrb[0].mxu0 %v595
      %v716 = vpop.f32.mrb[0].mxu0
      %v717 = vadd.f32 %v580, %v716
      %v718 = vpop.f32.mrb[0].mxu0
      %719 = vmatprep.mubr.f32.mxu0 0.0
      %720 = vmatmul.mubr.f32.gmra.mrb[0].mxu0 %v598
      %v721 = vpop.f32.mrb[0].mxu0
      %v722 = vadd.f32 %v580, %v721
      %v723 = vpop.f32.mrb[0].mxu0
      %724 = vmatprep.mubr.f32.mxu0 0.0
      %725 = vmatmul.mubr.f32.gmra.mrb[0].mxu0 %v601
      %v726 = vpop.f32.mrb[0].mxu0
      %v727 = vadd.f32 %v580, %v726
      %v728 = vpop.f32.mrb[0].mxu0
      %729 = vmatprep.mubr.f32.mxu0 0.0
      %730 = vmatmul.mubr.f32.gmra.mrb[0].mxu0 %v604
      %v731 = vpop.f32.mrb[0].mxu0
      %v732 = vadd.f32 %v580, %v731
      %v733 = vpop.f32.mrb[0].mxu0
      %734 = vmatprep.mubr.f32.mxu0 0.0
      %735 = vmatmul.mubr.f32.gmra.mrb[0].mxu0 %v607
      %v736 = vpop.f32.mrb[0].mxu0
      %v737 = vadd.f32 %v580, %v736
      %v738 = vpop.f32.mrb[0].mxu0
      %739 = vmatprep.mubr.f32.mxu0 0.0
      %740 = vmatmul.mubr.f32.gmra.mrb[0].mxu0 %v610
      %v741 = vpop.f32.mrb[0].mxu0
      %v742 = vadd.f32 %v580, %v741
      %v743 = vpop.f32.mrb[0].mxu0
      %744 = vmatprep.mubr.f32.mxu0 0.0
      %745 = vmatmul.mubr.f32.gmra.mrb[0].mxu0 %v613
      %v746 = vpop.f32.mrb[0].mxu0
      %v747 = vadd.f32 %v580, %v746
      %v748 = vpop.f32.mrb[0].mxu0
      %749 = vmatprep.mubr.f32.mxu0 0.0
      %750 = vmatmul.mubr.f32.gmra.mrb[0].mxu0 %v616
      %v751 = vpop.f32.mrb[0].mxu0
      %v752 = vadd.f32 %v580, %v751
      %v753 = vpop.f32.mrb[0].mxu0
      %754 = vmatprep.mubr.f32.mxu0 0.0
      %755 = vmatmul.mubr.f32.gmra.mrb[0].mxu0 %v619
      %v756 = vpop.f32.mrb[0].mxu0
      %v757 = vadd.f32 %v580, %v756
      %v758 = vpop.f32.mrb[0].mxu0
      %759 = vmatprep.mubr.f32.mxu0 0.0
      %760 = vmatmul.mubr.f32.gmra.mrb[0].mxu0 %v622
      %v761 = vpop.f32.mrb[0].mxu0
      %v762 = vadd.f32 %v580, %v761
      %v763 = vpop.f32.mrb[0].mxu0
      %764 = vmatprep.mubr.f32.mxu0 0.0
      %765 = vmatmul.mubr.f32.gmra.mrb[0].mxu0 %v625
      %v766 = vpop.f32.mrb[0].mxu0
      %v767 = vadd.f32 %v580, %v766
      %v768 = vpop.f32.mrb[0].mxu0
      %769 = vmatprep.mubr.f32.mxu0 0.0
      %770 = vmatmul.mubr.f32.gmra.mrb[0].mxu0 %v628
      %v771 = vpop.f32.mrb[0].mxu0
      %v772 = vadd.f32 %v580, %v771
      %v773 = vpop.f32.mrb[0].mxu0
      %774 = vdwg.mxu0
      %v775 = vxor.u32 %v697, 2147483648
      %v776 = vxor.u32 %v702, 2147483648
      %v777 = vxor.u32 %v707, 2147483648
      %v778 = vxor.u32 %v712, 2147483648
      %v779 = vxor.u32 %v717, 2147483648
      %v780 = vxor.u32 %v722, 2147483648
      %v781 = vxor.u32 %v727, 2147483648
      %v782 = vxor.u32 %v732, 2147483648
      %v783 = vxor.u32 %v737, 2147483648
      %v784 = vxor.u32 %v742, 2147483648
      %v785 = vxor.u32 %v747, 2147483648
      %v786 = vxor.u32 %v752, 2147483648
      %v787 = vxor.u32 %v757, 2147483648
      %v788 = vxor.u32 %v762, 2147483648
      %v789 = vxor.u32 %v767, 2147483648
      %v790 = vxor.u32 %v772, 2147483648
      %v791 = vmul.f32 %v775, 1.442695
      %v792 = vpow.pop %v791
      %v793 = vmul.f32 %v776, 1.442695
      %v794 = vpow.pop %v793
      %v795 = vmul.f32 %v777, 1.442695
      %v796 = vpow.pop %v795
      %v797 = vmul.f32 %v778, 1.442695
      %v798 = vpow.pop %v797
      %v799 = vmul.f32 %v779, 1.442695
      %v800 = vpow.pop %v799
      %v801 = vmul.f32 %v780, 1.442695
      %v802 = vpow.pop %v801
      %v803 = vmul.f32 %v781, 1.442695
      %v804 = vpow.pop %v803
      %v805 = vmul.f32 %v782, 1.442695
      %v806 = vpow.pop %v805
      %v807 = vmul.f32 %v783, 1.442695
      %v808 = vpow.pop %v807
      %v809 = vmul.f32 %v784, 1.442695
      %v810 = vpow.pop %v809
      %v811 = vmul.f32 %v785, 1.442695
      %v812 = vpow.pop %v811
      %v813 = vmul.f32 %v786, 1.442695
      %v814 = vpow.pop %v813
      %v815 = vmul.f32 %v787, 1.442695
      %v816 = vpow.pop %v815
      %v817 = vmul.f32 %v788, 1.442695
      %v818 = vpow.pop %v817
      %v819 = vmul.f32 %v789, 1.442695
      %v820 = vpow.pop %v819
      %v821 = vmul.f32 %v790, 1.442695
      %v822 = vpow.pop %v821
      %v823 = vadd.f32 %v792, 1.0
      %v824 = vadd.f32 %v794, 1.0
      %v825 = vadd.f32 %v796, 1.0
      %v826 = vadd.f32 %v798, 1.0
      %v827 = vadd.f32 %v800, 1.0
      %v828 = vadd.f32 %v802, 1.0
      %v829 = vadd.f32 %v804, 1.0
      %v830 = vadd.f32 %v806, 1.0
      %v831 = vadd.f32 %v808, 1.0
      %v832 = vadd.f32 %v810, 1.0
      %v833 = vadd.f32 %v812, 1.0
      %v834 = vadd.f32 %v814, 1.0
      %v835 = vadd.f32 %v816, 1.0
      %v836 = vadd.f32 %v818, 1.0
      %v837 = vadd.f32 %v820, 1.0
      %v838 = vadd.f32 %v822, 1.0
      %v839 = vrcp.pop %v823
      %v840 = vmul.f32 1.0, %v839
      %v841 = vrcp.pop %v824
      %v842 = vmul.f32 1.0, %v841
      %v843 = vrcp.pop %v825
      %v844 = vmul.f32 1.0, %v843
      %v845 = vrcp.pop %v826
      %v846 = vmul.f32 1.0, %v845
      %v847 = vrcp.pop %v827
      %v848 = vmul.f32 1.0, %v847
      %v849 = vrcp.pop %v828
      %v850 = vmul.f32 1.0, %v849
      %v851 = vrcp.pop %v829
      %v852 = vmul.f32 1.0, %v851
      %v853 = vrcp.pop %v830
      %v854 = vmul.f32 1.0, %v853
      %v855 = vrcp.pop %v831
      %v856 = vmul.f32 1.0, %v855
      %v857 = vrcp.pop %v832
      %v858 = vmul.f32 1.0, %v857
      %v859 = vrcp.pop %v833
      %v860 = vmul.f32 1.0, %v859
      %v861 = vrcp.pop %v834
      %v862 = vmul.f32 1.0, %v861
      %v863 = vrcp.pop %v835
      %v864 = vmul.f32 1.0, %v863
      %v865 = vrcp.pop %v836
      %v866 = vmul.f32 1.0, %v865
      %v867 = vrcp.pop %v837
      %v868 = vmul.f32 1.0, %v867
      %v869 = vrcp.pop %v838
      %v870 = vmul.f32 1.0, %v869
      %887 = vrot.lane.b32.xlu0 %v840, 64
      %v888 = vpop.permute.xlu0 %887
      %889 = vrot.lane.b32.xlu0 %v842, 64
      %v890 = vpop.permute.xlu0 %889
      %891 = vrot.lane.b32.xlu0 %v844, 64
      %v892 = vpop.permute.xlu0 %891
      %893 = vrot.lane.b32.xlu0 %v846, 64
      %v894 = vpop.permute.xlu0 %893
      %895 = vrot.lane.b32.xlu0 %v848, 64
      %v896 = vpop.permute.xlu0 %895
      %897 = vrot.lane.b32.xlu0 %v850, 64
      %v898 = vpop.permute.xlu0 %897
      %899 = vrot.lane.b32.xlu0 %v852, 64
      %v900 = vpop.permute.xlu0 %899
      %901 = vrot.lane.b32.xlu0 %v854, 64
      %v902 = vpop.permute.xlu0 %901
      %903 = vrot.lane.b32.xlu0 %v856, 64
      %v904 = vpop.permute.xlu0 %903
      %905 = vrot.lane.b32.xlu0 %v858, 64
      %v906 = vpop.permute.xlu0 %905
      %907 = vrot.lane.b32.xlu0 %v860, 64
      %v908 = vpop.permute.xlu0 %907
      %909 = vrot.lane.b32.xlu0 %v862, 64
      %v910 = vpop.permute.xlu0 %909
      %911 = vrot.lane.b32.xlu0 %v864, 64
      %v912 = vpop.permute.xlu0 %911
      %913 = vrot.lane.b32.xlu0 %v866, 64
      %v914 = vpop.permute.xlu0 %913
      %915 = vrot.lane.b32.xlu0 %v868, 64
      %v916 = vpop.permute.xlu0 %915
      %917 = vrot.lane.b32.xlu0 %v870, 64
      %v918 = vpop.permute.xlu0 %917
      %v935 = vmul.f32 %v697, %v888
      %v936 = vmul.f32 %v702, %v890
      %v937 = vmul.f32 %v707, %v892
      %v938 = vmul.f32 %v712, %v894
      %v939 = vmul.f32 %v717, %v896
      %v940 = vmul.f32 %v722, %v898
      %v941 = vmul.f32 %v727, %v900
      %v942 = vmul.f32 %v732, %v902
      %v943 = vmul.f32 %v737, %v904
      %v944 = vmul.f32 %v742, %v906
      %v945 = vmul.f32 %v747, %v908
      %v946 = vmul.f32 %v752, %v910
      %v947 = vmul.f32 %v757, %v912
      %v948 = vmul.f32 %v762, %v914
      %v949 = vmul.f32 %v767, %v916
      %v950 = vmul.f32 %v772, %v918
      %vm951 = vcmask 523264
      %952 = vst.msk [vmem:[#allocation2] sm:$0xff] %vm951, 0.0
      %953 = vst.msk [vmem:[#allocation2 + $0x20] sm:$0xff] %vm951, 0.0
      %954 = vst.msk [vmem:[#allocation2 + $0x40] sm:$0xff] %vm951, 0.0
      %955 = vst.msk [vmem:[#allocation2 + $0x60] sm:$0xff] %vm951, 0.0
      %956 = vst.msk [vmem:[#allocation2 + $0x80] sm:$0xff] %vm951, 0.0
      %957 = vst.msk [vmem:[#allocation2 + $0xa0] sm:$0xff] %vm951, 0.0
      %958 = vst.msk [vmem:[#allocation2 + $0xc0] sm:$0xff] %vm951, 0.0
      %959 = vst.msk [vmem:[#allocation2 + $0xe0] sm:$0xff] %vm951, 0.0
      %960 = vst.msk [vmem:[#allocation2 + $0x18] sm:$0xff] %vm951, 0.0
      %961 = vst.msk [vmem:[#allocation2 + $0x38] sm:$0xff] %vm951, 0.0
      %962 = vst.msk [vmem:[#allocation2 + $0x58] sm:$0xff] %vm951, 0.0
      %963 = vst.msk [vmem:[#allocation2 + $0x78] sm:$0xff] %vm951, 0.0
      %964 = vst.msk [vmem:[#allocation2 + $0x98] sm:$0xff] %vm951, 0.0
      %965 = vst.msk [vmem:[#allocation2 + $0xb8] sm:$0xff] %vm951, 0.0
      %966 = vst.msk [vmem:[#allocation2 + $0xd8] sm:$0xff] %vm951, 0.0
      %967 = vst.msk [vmem:[#allocation2 + $0xf8] sm:$0xff] %vm951, 0.0
      %968 = vst.msk [vmem:[#allocation2 + $0x8] sm:$0xff] %vm951, %v935
      %969 = vst.msk [vmem:[#allocation2 + $0x10] sm:$0xff] %vm951, %v936
      %970 = vst.msk [vmem:[#allocation2 + $0x28] sm:$0xff] %vm951, %v937
      %971 = vst.msk [vmem:[#allocation2 + $0x30] sm:$0xff] %vm951, %v938
      %972 = vst.msk [vmem:[#allocation2 + $0x48] sm:$0xff] %vm951, %v939
      %973 = vst.msk [vmem:[#allocation2 + $0x50] sm:$0xff] %vm951, %v940
      %974 = vst.msk [vmem:[#allocation2 + $0x68] sm:$0xff] %vm951, %v941
      %975 = vst.msk [vmem:[#allocation2 + $0x70] sm:$0xff] %vm951, %v942
      %976 = vst.msk [vmem:[#allocation2 + $0x88] sm:$0xff] %vm951, %v943
      %977 = vst.msk [vmem:[#allocation2 + $0x90] sm:$0xff] %vm951, %v944
      %978 = vst.msk [vmem:[#allocation2 + $0xa8] sm:$0xff] %vm951, %v945
      %979 = vst.msk [vmem:[#allocation2 + $0xb0] sm:$0xff] %vm951, %v946
      %980 = vst.msk [vmem:[#allocation2 + $0xc8] sm:$0xff] %vm951, %v947
      %981 = vst.msk [vmem:[#allocation2 + $0xd0] sm:$0xff] %vm951, %v948
      %982 = vst.msk [vmem:[#allocation2 + $0xe8] sm:$0xff] %vm951, %v949
      %983 = vst.msk [vmem:[#allocation2 + $0xf0] sm:$0xff] %vm951, %v950
      %v984 = vld [vmem:[#allocation2] sm:$0xff]
      %v985 = vld [vmem:[#allocation2 + $0x8] sm:$0xff]
      %v986 = vld [vmem:[#allocation2 + $0x10] sm:$0xff]
      %v987 = vld [vmem:[#allocation2 + $0x18] sm:$0xff]
      %v988 = vld [vmem:[#allocation2 + $0x20] sm:$0xff]
      %v989 = vld [vmem:[#allocation2 + $0x28] sm:$0xff]
      %v990 = vld [vmem:[#allocation2 + $0x30] sm:$0xff]
      %v991 = vld [vmem:[#allocation2 + $0x38] sm:$0xff]
      %v992 = vld [vmem:[#allocation2 + $0x40] sm:$0xff]
      %v993 = vld [vmem:[#allocation2 + $0x48] sm:$0xff]
      %v994 = vld [vmem:[#allocation2 + $0x50] sm:$0xff]
      %v995 = vld [vmem:[#allocation2 + $0x58] sm:$0xff]
      %v996 = vld [vmem:[#allocation2 + $0x60] sm:$0xff]
      %v997 = vld [vmem:[#allocation2 + $0x68] sm:$0xff]
      %v998 = vld [vmem:[#allocation2 + $0x70] sm:$0xff]
      %v999 = vld [vmem:[#allocation2 + $0x78] sm:$0xff]
      %v1000 = vld [vmem:[#allocation2 + $0x80] sm:$0xff]
      %v1001 = vld [vmem:[#allocation2 + $0x88] sm:$0xff]
      %v1002 = vld [vmem:[#allocation2 + $0x90] sm:$0xff]
      %v1003 = vld [vmem:[#allocation2 + $0x98] sm:$0xff]
      %v1004 = vld [vmem:[#allocation2 + $0xa0] sm:$0xff]
      %v1005 = vld [vmem:[#allocation2 + $0xa8] sm:$0xff]
      %v1006 = vld [vmem:[#allocation2 + $0xb0] sm:$0xff]
      %v1007 = vld [vmem:[#allocation2 + $0xb8] sm:$0xff]
      %v1008 = vld [vmem:[#allocation2 + $0xc0] sm:$0xff]
      %v1009 = vld [vmem:[#allocation2 + $0xc8] sm:$0xff]
      %v1010 = vld [vmem:[#allocation2 + $0xd0] sm:$0xff]
      %v1011 = vld [vmem:[#allocation2 + $0xd8] sm:$0xff]
      %v1012 = vld [vmem:[#allocation2 + $0xe0] sm:$0xff]
      %v1013 = vld [vmem:[#allocation2 + $0xe8] sm:$0xff]
      %v1014 = vld [vmem:[#allocation2 + $0xf0] sm:$0xff]
      %v1015 = vld [vmem:[#allocation2 + $0xf8] sm:$0xff]
      %v1016 = vld [vmem:[%s2 + $0x3] sm:$0x1]
      %v1017 = vlaneseq
      %v1018 = vshrl.u32 %v1017, 7
      %v1019 = vsub.s32 0, %v1018
      %v1020 = vrot.slane %v1016, %v1019
      %v1021 = vmul.f32 %v985, %v1020
      %v1022 = vmul.f32 %v986, %v1020
      %v1023 = vmul.f32 %v989, %v1020
      %v1024 = vmul.f32 %v990, %v1020
      %v1025 = vmul.f32 %v993, %v1020
      %v1026 = vmul.f32 %v994, %v1020
      %v1027 = vmul.f32 %v997, %v1020
      %v1028 = vmul.f32 %v998, %v1020
      %v1029 = vmul.f32 %v1001, %v1020
      %v1030 = vmul.f32 %v1002, %v1020
      %v1031 = vmul.f32 %v1005, %v1020
      %v1032 = vmul.f32 %v1006, %v1020
      %v1033 = vmul.f32 %v1009, %v1020
      %v1034 = vmul.f32 %v1010, %v1020
      %v1035 = vmul.f32 %v1013, %v1020
      %v1036 = vmul.f32 %v1014, %v1020
      %v1037 = vld [vmem:[%s2 + $0x7] sm:$0x1]
      %v1038 = vlaneseq
      %v1039 = vshrl.u32 %v1038, 7
      %v1040 = vsub.s32 0, %v1039
      %v1041 = vrot.slane %v1037, %v1040
      %v1042 = vadd.f32 %v1021, %v1041
      %v1043 = vadd.f32 %v1022, %v1041
      %v1044 = vadd.f32 %v1023, %v1041
      %v1045 = vadd.f32 %v1024, %v1041
      %v1046 = vadd.f32 %v1025, %v1041
      %v1047 = vadd.f32 %v1026, %v1041
      %v1048 = vadd.f32 %v1027, %v1041
      %v1049 = vadd.f32 %v1028, %v1041
      %v1050 = vadd.f32 %v1029, %v1041
      %v1051 = vadd.f32 %v1030, %v1041
      %v1052 = vadd.f32 %v1031, %v1041
      %v1053 = vadd.f32 %v1032, %v1041
      %v1054 = vadd.f32 %v1033, %v1041
      %v1055 = vadd.f32 %v1034, %v1041
      %v1056 = vadd.f32 %v1035, %v1041
      %v1057 = vadd.f32 %v1036, %v1041
      %v1058 = vrot.slane %v985, 1
      %v1059 = vrot.slane %v986, 1
      %v1060 = vrot.slane %v987, 1
      %v1061 = vrot.slane %v989, 1
      %v1062 = vrot.slane %v990, 1
      %v1063 = vrot.slane %v991, 1
      %v1064 = vrot.slane %v993, 1
      %v1065 = vrot.slane %v994, 1
      %v1066 = vrot.slane %v995, 1
      %v1067 = vrot.slane %v997, 1
      %v1068 = vrot.slane %v998, 1
      %v1069 = vrot.slane %v999, 1
      %v1070 = vrot.slane %v1001, 1
      %v1071 = vrot.slane %v1002, 1
      %v1072 = vrot.slane %v1003, 1
      %v1073 = vrot.slane %v1005, 1
      %v1074 = vrot.slane %v1006, 1
      %v1075 = vrot.slane %v1007, 1
      %v1076 = vrot.slane %v1009, 1
      %v1077 = vrot.slane %v1010, 1
      %v1078 = vrot.slane %v1011, 1
      %v1079 = vrot.slane %v1013, 1
      %v1080 = vrot.slane %v1014, 1
      %v1081 = vrot.slane %v1015, 1
      %v1082 = vlaneseq
      %v1083 = vshrl.u32 %v1082, 7
      %vm1084 = vcmp.lt.s32.totalorder %v1083, 7
      %v1085 = vsel %vm1084, %v1080, %v1081
      %v1086 = vsel %vm1084, %v1079, %v1080
      %v1087 = vsel %vm1084, %v1077, %v1078
      %v1088 = vsel %vm1084, %v1076, %v1077
      %v1089 = vsel %vm1084, %v1074, %v1075
      %v1090 = vsel %vm1084, %v1073, %v1074
      %v1091 = vsel %vm1084, %v1071, %v1072
      %v1092 = vsel %vm1084, %v1070, %v1071
      %v1093 = vsel %vm1084, %v1068, %v1069
      %v1094 = vsel %vm1084, %v1067, %v1068
      %v1095 = vsel %vm1084, %v1065, %v1066
      %v1096 = vsel %vm1084, %v1064, %v1065
      %v1097 = vsel %vm1084, %v1062, %v1063
      %v1098 = vsel %vm1084, %v1061, %v1062
      %v1099 = vsel %vm1084, %v1059, %v1060
      %v1100 = vsel %vm1084, %v1058, %v1059
      %v1101 = vld [vmem:[%s2 + $0x4] sm:$0x1]
      %v1102 = vlaneseq
      %v1103 = vshrl.u32 %v1102, 7
      %v1104 = vsub.s32 0, %v1103
      %v1105 = vrot.slane %v1101, %v1104
      %v1106 = vmul.f32 %v1100, %v1105
      %v1107 = vmul.f32 %v1099, %v1105
      %v1108 = vmul.f32 %v1098, %v1105
      %v1109 = vmul.f32 %v1097, %v1105
      %v1110 = vmul.f32 %v1096, %v1105
      %v1111 = vmul.f32 %v1095, %v1105
      %v1112 = vmul.f32 %v1094, %v1105
      %v1113 = vmul.f32 %v1093, %v1105
      %v1114 = vmul.f32 %v1092, %v1105
      %v1115 = vmul.f32 %v1091, %v1105
      %v1116 = vmul.f32 %v1090, %v1105
      %v1117 = vmul.f32 %v1089, %v1105
      %v1118 = vmul.f32 %v1088, %v1105
      %v1119 = vmul.f32 %v1087, %v1105
      %v1120 = vmul.f32 %v1086, %v1105
      %v1121 = vmul.f32 %v1085, %v1105
      %v1122 = vadd.f32 %v1042, %v1106
      %v1123 = vadd.f32 %v1043, %v1107
      %v1124 = vadd.f32 %v1044, %v1108
      %v1125 = vadd.f32 %v1045, %v1109
      %v1126 = vadd.f32 %v1046, %v1110
      %v1127 = vadd.f32 %v1047, %v1111
      %v1128 = vadd.f32 %v1048, %v1112
      %v1129 = vadd.f32 %v1049, %v1113
      %v1130 = vadd.f32 %v1050, %v1114
      %v1131 = vadd.f32 %v1051, %v1115
      %v1132 = vadd.f32 %v1052, %v1116
      %v1133 = vadd.f32 %v1053, %v1117
      %v1134 = vadd.f32 %v1054, %v1118
      %v1135 = vadd.f32 %v1055, %v1119
      %v1136 = vadd.f32 %v1056, %v1120
      %v1137 = vadd.f32 %v1057, %v1121
      %v1138 = vrot.slane %v984, 7
      %v1139 = vrot.slane %v985, 7
      %v1140 = vrot.slane %v986, 7
      %v1141 = vrot.slane %v988, 7
      %v1142 = vrot.slane %v989, 7
      %v1143 = vrot.slane %v990, 7
      %v1144 = vrot.slane %v992, 7
      %v1145 = vrot.slane %v993, 7
      %v1146 = vrot.slane %v994, 7
      %v1147 = vrot.slane %v996, 7
      %v1148 = vrot.slane %v997, 7
      %v1149 = vrot.slane %v998, 7
      %v1150 = vrot.slane %v1000, 7
      %v1151 = vrot.slane %v1001, 7
      %v1152 = vrot.slane %v1002, 7
      %v1153 = vrot.slane %v1004, 7
      %v1154 = vrot.slane %v1005, 7
      %v1155 = vrot.slane %v1006, 7
      %v1156 = vrot.slane %v1008, 7
      %v1157 = vrot.slane %v1009, 7
      %v1158 = vrot.slane %v1010, 7
      %v1159 = vrot.slane %v1012, 7
      %v1160 = vrot.slane %v1013, 7
      %v1161 = vrot.slane %v1014, 7
      %vm1162 = vcmp.lt.s32.totalorder %v1083, 1
      %v1163 = vsel %vm1162, %v1160, %v1161
      %v1164 = vsel %vm1162, %v1159, %v1160
      %v1165 = vsel %vm1162, %v1157, %v1158
      %v1166 = vsel %vm1162, %v1156, %v1157
      %v1167 = vsel %vm1162, %v1154, %v1155
      %v1168 = vsel %vm1162, %v1153, %v1154
      %v1169 = vsel %vm1162, %v1151, %v1152
      %v1170 = vsel %vm1162, %v1150, %v1151
      %v1171 = vsel %vm1162, %v1148, %v1149
      %v1172 = vsel %vm1162, %v1147, %v1148
      %v1173 = vsel %vm1162, %v1145, %v1146
      %v1174 = vsel %vm1162, %v1144, %v1145
      %v1175 = vsel %vm1162, %v1142, %v1143
      %v1176 = vsel %vm1162, %v1141, %v1142
      %v1177 = vsel %vm1162, %v1139, %v1140
      %v1178 = vsel %vm1162, %v1138, %v1139
      %v1179 = vld [vmem:[%s2 + $0x2] sm:$0x1]
      %v1180 = vlaneseq
      %v1181 = vshrl.u32 %v1180, 7
      %v1182 = vsub.s32 0, %v1181
      %v1183 = vrot.slane %v1179, %v1182
      %v1184 = vmul.f32 %v1178, %v1183
      %v1185 = vmul.f32 %v1177, %v1183
      %v1186 = vmul.f32 %v1176, %v1183
      %v1187 = vmul.f32 %v1175, %v1183
      %v1188 = vmul.f32 %v1174, %v1183
      %v1189 = vmul.f32 %v1173, %v1183
      %v1190 = vmul.f32 %v1172, %v1183
      %v1191 = vmul.f32 %v1171, %v1183
      %v1192 = vmul.f32 %v1170, %v1183
      %v1193 = vmul.f32 %v1169, %v1183
      %v1194 = vmul.f32 %v1168, %v1183
      %v1195 = vmul.f32 %v1167, %v1183
      %v1196 = vmul.f32 %v1166, %v1183
      %v1197 = vmul.f32 %v1165, %v1183
      %v1198 = vmul.f32 %v1164, %v1183
      %v1199 = vmul.f32 %v1163, %v1183
      %v1200 = vadd.f32 %v1122, %v1184
      %v1201 = vadd.f32 %v1123, %v1185
      %v1202 = vadd.f32 %v1124, %v1186
      %v1203 = vadd.f32 %v1125, %v1187
      %v1204 = vadd.f32 %v1126, %v1188
      %v1205 = vadd.f32 %v1127, %v1189
      %v1206 = vadd.f32 %v1128, %v1190
      %v1207 = vadd.f32 %v1129, %v1191
      %v1208 = vadd.f32 %v1130, %v1192
      %v1209 = vadd.f32 %v1131, %v1193
      %v1210 = vadd.f32 %v1132, %v1194
      %v1211 = vadd.f32 %v1133, %v1195
      %v1212 = vadd.f32 %v1134, %v1196
      %v1213 = vadd.f32 %v1135, %v1197
      %v1214 = vadd.f32 %v1136, %v1198
      %v1215 = vadd.f32 %v1137, %v1199
      %v1216 = vrot.slane %v985, 2
      %v1217 = vrot.slane %v986, 2
      %v1218 = vrot.slane %v987, 2
      %v1219 = vrot.slane %v989, 2
      %v1220 = vrot.slane %v990, 2
      %v1221 = vrot.slane %v991, 2
      %v1222 = vrot.slane %v993, 2
      %v1223 = vrot.slane %v994, 2
      %v1224 = vrot.slane %v995, 2
      %v1225 = vrot.slane %v997, 2
      %v1226 = vrot.slane %v998, 2
      %v1227 = vrot.slane %v999, 2
      %v1228 = vrot.slane %v1001, 2
      %v1229 = vrot.slane %v1002, 2
      %v1230 = vrot.slane %v1003, 2
      %v1231 = vrot.slane %v1005, 2
      %v1232 = vrot.slane %v1006, 2
      %v1233 = vrot.slane %v1007, 2
      %v1234 = vrot.slane %v1009, 2
      %v1235 = vrot.slane %v1010, 2
      %v1236 = vrot.slane %v1011, 2
      %v1237 = vrot.slane %v1013, 2
      %v1238 = vrot.slane %v1014, 2
      %v1239 = vrot.slane %v1015, 2
      %vm1240 = vcmp.lt.s32.totalorder %v1083, 6
      %v1241 = vsel %vm1240, %v1238, %v1239
      %v1242 = vsel %vm1240, %v1237, %v1238
      %v1243 = vsel %vm1240, %v1235, %v1236
      %v1244 = vsel %vm1240, %v1234, %v1235
      %v1245 = vsel %vm1240, %v1232, %v1233
      %v1246 = vsel %vm1240, %v1231, %v1232
      %v1247 = vsel %vm1240, %v1229, %v1230
      %v1248 = vsel %vm1240, %v1228, %v1229
      %v1249 = vsel %vm1240, %v1226, %v1227
      %v1250 = vsel %vm1240, %v1225, %v1226
      %v1251 = vsel %vm1240, %v1223, %v1224
      %v1252 = vsel %vm1240, %v1222, %v1223
      %v1253 = vsel %vm1240, %v1220, %v1221
      %v1254 = vsel %vm1240, %v1219, %v1220
      %v1255 = vsel %vm1240, %v1217, %v1218
      %v1256 = vsel %vm1240, %v1216, %v1217
      %v1257 = vld [vmem:[%s2 + $0x5] sm:$0x1]
      %v1258 = vlaneseq
      %v1259 = vshrl.u32 %v1258, 7
      %v1260 = vsub.s32 0, %v1259
      %v1261 = vrot.slane %v1257, %v1260
      %v1262 = vmul.f32 %v1256, %v1261
      %v1263 = vmul.f32 %v1255, %v1261
      %v1264 = vmul.f32 %v1254, %v1261
      %v1265 = vmul.f32 %v1253, %v1261
      %v1266 = vmul.f32 %v1252, %v1261
      %v1267 = vmul.f32 %v1251, %v1261
      %v1268 = vmul.f32 %v1250, %v1261
      %v1269 = vmul.f32 %v1249, %v1261
      %v1270 = vmul.f32 %v1248, %v1261
      %v1271 = vmul.f32 %v1247, %v1261
      %v1272 = vmul.f32 %v1246, %v1261
      %v1273 = vmul.f32 %v1245, %v1261
      %v1274 = vmul.f32 %v1244, %v1261
      %v1275 = vmul.f32 %v1243, %v1261
      %v1276 = vmul.f32 %v1242, %v1261
      %v1277 = vmul.f32 %v1241, %v1261
      %v1278 = vadd.f32 %v1200, %v1262
      %v1279 = vadd.f32 %v1201, %v1263
      %v1280 = vadd.f32 %v1202, %v1264
      %v1281 = vadd.f32 %v1203, %v1265
      %v1282 = vadd.f32 %v1204, %v1266
      %v1283 = vadd.f32 %v1205, %v1267
      %v1284 = vadd.f32 %v1206, %v1268
      %v1285 = vadd.f32 %v1207, %v1269
      %v1286 = vadd.f32 %v1208, %v1270
      %v1287 = vadd.f32 %v1209, %v1271
      %v1288 = vadd.f32 %v1210, %v1272
      %v1289 = vadd.f32 %v1211, %v1273
      %v1290 = vadd.f32 %v1212, %v1274
      %v1291 = vadd.f32 %v1213, %v1275
      %v1292 = vadd.f32 %v1214, %v1276
      %v1293 = vadd.f32 %v1215, %v1277
      %v1294 = vrot.slane %v984, 6
      %v1295 = vrot.slane %v985, 6
      %v1296 = vrot.slane %v986, 6
      %v1297 = vrot.slane %v988, 6
      %v1298 = vrot.slane %v989, 6
      %v1299 = vrot.slane %v990, 6
      %v1300 = vrot.slane %v992, 6
      %v1301 = vrot.slane %v993, 6
      %v1302 = vrot.slane %v994, 6
      %v1303 = vrot.slane %v996, 6
      %v1304 = vrot.slane %v997, 6
      %v1305 = vrot.slane %v998, 6
      %v1306 = vrot.slane %v1000, 6
      %v1307 = vrot.slane %v1001, 6
      %v1308 = vrot.slane %v1002, 6
      %v1309 = vrot.slane %v1004, 6
      %v1310 = vrot.slane %v1005, 6
      %v1311 = vrot.slane %v1006, 6
      %v1312 = vrot.slane %v1008, 6
      %v1313 = vrot.slane %v1009, 6
      %v1314 = vrot.slane %v1010, 6
      %v1315 = vrot.slane %v1012, 6
      %v1316 = vrot.slane %v1013, 6
      %v1317 = vrot.slane %v1014, 6
      %vm1318 = vcmp.lt.s32.totalorder %v1083, 2
      %v1319 = vsel %vm1318, %v1316, %v1317
      %v1320 = vsel %vm1318, %v1315, %v1316
      %v1321 = vsel %vm1318, %v1313, %v1314
      %v1322 = vsel %vm1318, %v1312, %v1313
      %v1323 = vsel %vm1318, %v1310, %v1311
      %v1324 = vsel %vm1318, %v1309, %v1310
      %v1325 = vsel %vm1318, %v1307, %v1308
      %v1326 = vsel %vm1318, %v1306, %v1307
      %v1327 = vsel %vm1318, %v1304, %v1305
      %v1328 = vsel %vm1318, %v1303, %v1304
      %v1329 = vsel %vm1318, %v1301, %v1302
      %v1330 = vsel %vm1318, %v1300, %v1301
      %v1331 = vsel %vm1318, %v1298, %v1299
      %v1332 = vsel %vm1318, %v1297, %v1298
      %v1333 = vsel %vm1318, %v1295, %v1296
      %v1334 = vsel %vm1318, %v1294, %v1295
      %v1335 = vld [vmem:[%s2 + $0x1] sm:$0x1]
      %v1336 = vlaneseq
      %v1337 = vshrl.u32 %v1336, 7
      %v1338 = vsub.s32 0, %v1337
      %v1339 = vrot.slane %v1335, %v1338
      %v1340 = vmul.f32 %v1334, %v1339
      %v1341 = vmul.f32 %v1333, %v1339
      %v1342 = vmul.f32 %v1332, %v1339
      %v1343 = vmul.f32 %v1331, %v1339
      %v1344 = vmul.f32 %v1330, %v1339
      %v1345 = vmul.f32 %v1329, %v1339
      %v1346 = vmul.f32 %v1328, %v1339
      %v1347 = vmul.f32 %v1327, %v1339
      %v1348 = vmul.f32 %v1326, %v1339
      %v1349 = vmul.f32 %v1325, %v1339
      %v1350 = vmul.f32 %v1324, %v1339
      %v1351 = vmul.f32 %v1323, %v1339
      %v1352 = vmul.f32 %v1322, %v1339
      %v1353 = vmul.f32 %v1321, %v1339
      %v1354 = vmul.f32 %v1320, %v1339
      %v1355 = vmul.f32 %v1319, %v1339
      %v1356 = vadd.f32 %v1278, %v1340
      %v1357 = vadd.f32 %v1279, %v1341
      %v1358 = vadd.f32 %v1280, %v1342
      %v1359 = vadd.f32 %v1281, %v1343
      %v1360 = vadd.f32 %v1282, %v1344
      %v1361 = vadd.f32 %v1283, %v1345
      %v1362 = vadd.f32 %v1284, %v1346
      %v1363 = vadd.f32 %v1285, %v1347
      %v1364 = vadd.f32 %v1286, %v1348
      %v1365 = vadd.f32 %v1287, %v1349
      %v1366 = vadd.f32 %v1288, %v1350
      %v1367 = vadd.f32 %v1289, %v1351
      %v1368 = vadd.f32 %v1290, %v1352
      %v1369 = vadd.f32 %v1291, %v1353
      %v1370 = vadd.f32 %v1292, %v1354
      %v1371 = vadd.f32 %v1293, %v1355
      %v1372 = vrot.slane %v985, 3
      %v1373 = vrot.slane %v986, 3
      %v1374 = vrot.slane %v987, 3
      %v1375 = vrot.slane %v989, 3
      %v1376 = vrot.slane %v990, 3
      %v1377 = vrot.slane %v991, 3
      %v1378 = vrot.slane %v993, 3
      %v1379 = vrot.slane %v994, 3
      %v1380 = vrot.slane %v995, 3
      %v1381 = vrot.slane %v997, 3
      %v1382 = vrot.slane %v998, 3
      %v1383 = vrot.slane %v999, 3
      %v1384 = vrot.slane %v1001, 3
      %v1385 = vrot.slane %v1002, 3
      %v1386 = vrot.slane %v1003, 3
      %v1387 = vrot.slane %v1005, 3
      %v1388 = vrot.slane %v1006, 3
      %v1389 = vrot.slane %v1007, 3
      %v1390 = vrot.slane %v1009, 3
      %v1391 = vrot.slane %v1010, 3
      %v1392 = vrot.slane %v1011, 3
      %v1393 = vrot.slane %v1013, 3
      %v1394 = vrot.slane %v1014, 3
      %v1395 = vrot.slane %v1015, 3
      %vm1396 = vcmp.lt.s32.totalorder %v1083, 5
      %v1397 = vsel %vm1396, %v1394, %v1395
      %v1398 = vsel %vm1396, %v1393, %v1394
      %v1399 = vsel %vm1396, %v1391, %v1392
      %v1400 = vsel %vm1396, %v1390, %v1391
      %v1401 = vsel %vm1396, %v1388, %v1389
      %v1402 = vsel %vm1396, %v1387, %v1388
      %v1403 = vsel %vm1396, %v1385, %v1386
      %v1404 = vsel %vm1396, %v1384, %v1385
      %v1405 = vsel %vm1396, %v1382, %v1383
      %v1406 = vsel %vm1396, %v1381, %v1382
      %v1407 = vsel %vm1396, %v1379, %v1380
      %v1408 = vsel %vm1396, %v1378, %v1379
      %v1409 = vsel %vm1396, %v1376, %v1377
      %v1410 = vsel %vm1396, %v1375, %v1376
      %v1411 = vsel %vm1396, %v1373, %v1374
      %v1412 = vsel %vm1396, %v1372, %v1373
      %v1413 = vld [vmem:[%s2 + $0x6] sm:$0x1]
      %v1414 = vlaneseq
      %v1415 = vshrl.u32 %v1414, 7
      %v1416 = vsub.s32 0, %v1415
      %v1417 = vrot.slane %v1413, %v1416
      %v1418 = vmul.f32 %v1412, %v1417
      %v1419 = vmul.f32 %v1411, %v1417
      %v1420 = vmul.f32 %v1410, %v1417
      %v1421 = vmul.f32 %v1409, %v1417
      %v1422 = vmul.f32 %v1408, %v1417
      %v1423 = vmul.f32 %v1407, %v1417
      %v1424 = vmul.f32 %v1406, %v1417
      %v1425 = vmul.f32 %v1405, %v1417
      %v1426 = vmul.f32 %v1404, %v1417
      %v1427 = vmul.f32 %v1403, %v1417
      %v1428 = vmul.f32 %v1402, %v1417
      %v1429 = vmul.f32 %v1401, %v1417
      %v1430 = vmul.f32 %v1400, %v1417
      %v1431 = vmul.f32 %v1399, %v1417
      %v1432 = vmul.f32 %v1398, %v1417
      %v1433 = vmul.f32 %v1397, %v1417
      %v1434 = vadd.f32 %v1356, %v1418
      %v1435 = vadd.f32 %v1357, %v1419
      %v1436 = vadd.f32 %v1358, %v1420
      %v1437 = vadd.f32 %v1359, %v1421
      %v1438 = vadd.f32 %v1360, %v1422
      %v1439 = vadd.f32 %v1361, %v1423
      %v1440 = vadd.f32 %v1362, %v1424
      %v1441 = vadd.f32 %v1363, %v1425
      %v1442 = vadd.f32 %v1364, %v1426
      %v1443 = vadd.f32 %v1365, %v1427
      %v1444 = vadd.f32 %v1366, %v1428
      %v1445 = vadd.f32 %v1367, %v1429
      %v1446 = vadd.f32 %v1368, %v1430
      %v1447 = vadd.f32 %v1369, %v1431
      %v1448 = vadd.f32 %v1370, %v1432
      %v1449 = vadd.f32 %v1371, %v1433
      %v1450 = vrot.slane %v984, 5
      %v1451 = vrot.slane %v985, 5
      %v1452 = vrot.slane %v986, 5
      %v1453 = vrot.slane %v988, 5
      %v1454 = vrot.slane %v989, 5
      %v1455 = vrot.slane %v990, 5
      %v1456 = vrot.slane %v992, 5
      %v1457 = vrot.slane %v993, 5
      %v1458 = vrot.slane %v994, 5
      %v1459 = vrot.slane %v996, 5
      %v1460 = vrot.slane %v997, 5
      %v1461 = vrot.slane %v998, 5
      %v1462 = vrot.slane %v1000, 5
      %v1463 = vrot.slane %v1001, 5
      %v1464 = vrot.slane %v1002, 5
      %v1465 = vrot.slane %v1004, 5
      %v1466 = vrot.slane %v1005, 5
      %v1467 = vrot.slane %v1006, 5
      %v1468 = vrot.slane %v1008, 5
      %v1469 = vrot.slane %v1009, 5
      %v1470 = vrot.slane %v1010, 5
      %v1471 = vrot.slane %v1012, 5
      %v1472 = vrot.slane %v1013, 5
      %v1473 = vrot.slane %v1014, 5
      %vm1474 = vcmp.lt.s32.totalorder %v1083, 3
      %v1475 = vsel %vm1474, %v1472, %v1473
      %v1476 = vsel %vm1474, %v1471, %v1472
      %v1477 = vsel %vm1474, %v1469, %v1470
      %v1478 = vsel %vm1474, %v1468, %v1469
      %v1479 = vsel %vm1474, %v1466, %v1467
      %v1480 = vsel %vm1474, %v1465, %v1466
      %v1481 = vsel %vm1474, %v1463, %v1464
      %v1482 = vsel %vm1474, %v1462, %v1463
      %v1483 = vsel %vm1474, %v1460, %v1461
      %v1484 = vsel %vm1474, %v1459, %v1460
      %v1485 = vsel %vm1474, %v1457, %v1458
      %v1486 = vsel %vm1474, %v1456, %v1457
      %v1487 = vsel %vm1474, %v1454, %v1455
      %v1488 = vsel %vm1474, %v1453, %v1454
      %v1489 = vsel %vm1474, %v1451, %v1452
      %v1490 = vsel %vm1474, %v1450, %v1451
      %v1491 = vld [vmem:[%s2] sm:$0x1]
      %v1492 = vlaneseq
      %v1493 = vshrl.u32 %v1492, 7
      %v1494 = vsub.s32 0, %v1493
      %v1495 = vrot.slane %v1491, %v1494
      %v1496 = vmul.f32 %v1490, %v1495
      %v1497 = vmul.f32 %v1489, %v1495
      %v1498 = vmul.f32 %v1488, %v1495
      %v1499 = vmul.f32 %v1487, %v1495
      %v1500 = vmul.f32 %v1486, %v1495
      %v1501 = vmul.f32 %v1485, %v1495
      %v1502 = vmul.f32 %v1484, %v1495
      %v1503 = vmul.f32 %v1483, %v1495
      %v1504 = vmul.f32 %v1482, %v1495
      %v1505 = vmul.f32 %v1481, %v1495
      %v1506 = vmul.f32 %v1480, %v1495
      %v1507 = vmul.f32 %v1479, %v1495
      %v1508 = vmul.f32 %v1478, %v1495
      %v1509 = vmul.f32 %v1477, %v1495
      %v1510 = vmul.f32 %v1476, %v1495
      %v1511 = vmul.f32 %v1475, %v1495
      %v1512 = vadd.f32 %v1434, %v1496
      %v1513 = vadd.f32 %v1435, %v1497
      %v1514 = vadd.f32 %v1436, %v1498
      %v1515 = vadd.f32 %v1437, %v1499
      %v1516 = vadd.f32 %v1438, %v1500
      %v1517 = vadd.f32 %v1439, %v1501
      %v1518 = vadd.f32 %v1440, %v1502
      %v1519 = vadd.f32 %v1441, %v1503
      %v1520 = vadd.f32 %v1442, %v1504
      %v1521 = vadd.f32 %v1443, %v1505
      %v1522 = vadd.f32 %v1444, %v1506
      %v1523 = vadd.f32 %v1445, %v1507
      %v1524 = vadd.f32 %v1446, %v1508
      %v1525 = vadd.f32 %v1447, %v1509
      %v1526 = vadd.f32 %v1448, %v1510
      %v1527 = vadd.f32 %v1449, %v1511
      %v1528 = vld [vmem:[%s2 + $0x8] sm:$0x1]
      %v1529 = vld [vmem:[%s2 + $0x9] sm:$0x1]
      %v1530 = vsel %vm951, %v1512, 0.0
      %1531 = vadd.xlane.f32.xlu0 %v1530
      %v1532 = vpop.xlane.xlu0 %1531
      %v1533 = vsel %vm951, %v1513, 0.0
      %1534 = vadd.xlane.f32.xlu0 %v1533
      %v1535 = vpop.xlane.xlu0 %1534
      %v1536 = vsel %vm951, %v1514, 0.0
      %1537 = vadd.xlane.f32.xlu0 %v1536
      %v1538 = vpop.xlane.xlu0 %1537
      %v1539 = vsel %vm951, %v1515, 0.0
      %1540 = vadd.xlane.f32.xlu0 %v1539
      %v1541 = vpop.xlane.xlu0 %1540
      %v1542 = vsel %vm951, %v1516, 0.0
      %1543 = vadd.xlane.f32.xlu0 %v1542
      %v1544 = vpop.xlane.xlu0 %1543
      %v1545 = vsel %vm951, %v1517, 0.0
      %1546 = vadd.xlane.f32.xlu0 %v1545
      %v1547 = vpop.xlane.xlu0 %1546
      %v1548 = vsel %vm951, %v1518, 0.0
      %1549 = vadd.xlane.f32.xlu0 %v1548
      %v1550 = vpop.xlane.xlu0 %1549
      %v1551 = vsel %vm951, %v1519, 0.0
      %1552 = vadd.xlane.f32.xlu0 %v1551
      %v1553 = vpop.xlane.xlu0 %1552
      %v1554 = vsel %vm951, %v1520, 0.0
      %1555 = vadd.xlane.f32.xlu0 %v1554
      %v1556 = vpop.xlane.xlu0 %1555
      %v1557 = vsel %vm951, %v1521, 0.0
      %1558 = vadd.xlane.f32.xlu0 %v1557
      %v1559 = vpop.xlane.xlu0 %1558
      %v1560 = vsel %vm951, %v1522, 0.0
      %1561 = vadd.xlane.f32.xlu0 %v1560
      %v1562 = vpop.xlane.xlu0 %1561
      %v1563 = vsel %vm951, %v1523, 0.0
      %1564 = vadd.xlane.f32.xlu0 %v1563
      %v1565 = vpop.xlane.xlu0 %1564
      %v1566 = vsel %vm951, %v1524, 0.0
      %1567 = vadd.xlane.f32.xlu0 %v1566
      %v1568 = vpop.xlane.xlu0 %1567
      %v1569 = vsel %vm951, %v1525, 0.0
      %1570 = vadd.xlane.f32.xlu0 %v1569
      %v1571 = vpop.xlane.xlu0 %1570
      %v1572 = vsel %vm951, %v1526, 0.0
      %1573 = vadd.xlane.f32.xlu0 %v1572
      %v1574 = vpop.xlane.xlu0 %1573
      %v1575 = vsel %vm951, %v1527, 0.0
      %1576 = vadd.xlane.f32.xlu0 %v1575
      %v1577 = vpop.xlane.xlu0 %1576
      %v1578 = vadd.f32 %v1532, %v1535
      %v1579 = vrot.slane %v1578, 4
      %v1580 = vadd.f32 %v1578, %v1579
      %v1581 = vrot.slane %v1580, 2
      %v1582 = vadd.f32 %v1580, %v1581
      %v1583 = vrot.slane %v1582, 1
      %v1584 = vadd.f32 %v1582, %v1583
      %v1585 = vadd.f32 %v1538, %v1541
      %v1586 = vrot.slane %v1585, 4
      %v1587 = vadd.f32 %v1585, %v1586
      %v1588 = vrot.slane %v1587, 2
      %v1589 = vadd.f32 %v1587, %v1588
      %v1590 = vrot.slane %v1589, 1
      %v1591 = vadd.f32 %v1589, %v1590
      %v1592 = vadd.f32 %v1544, %v1547
      %v1593 = vrot.slane %v1592, 4
      %v1594 = vadd.f32 %v1592, %v1593
      %v1595 = vrot.slane %v1594, 2
      %v1596 = vadd.f32 %v1594, %v1595
      %v1597 = vrot.slane %v1596, 1
      %v1598 = vadd.f32 %v1596, %v1597
      %v1599 = vadd.f32 %v1550, %v1553
      %v1600 = vrot.slane %v1599, 4
      %v1601 = vadd.f32 %v1599, %v1600
      %v1602 = vrot.slane %v1601, 2
      %v1603 = vadd.f32 %v1601, %v1602
      %v1604 = vrot.slane %v1603, 1
      %v1605 = vadd.f32 %v1603, %v1604
      %v1606 = vadd.f32 %v1556, %v1559
      %v1607 = vrot.slane %v1606, 4
      %v1608 = vadd.f32 %v1606, %v1607
      %v1609 = vrot.slane %v1608, 2
      %v1610 = vadd.f32 %v1608, %v1609
      %v1611 = vrot.slane %v1610, 1
      %v1612 = vadd.f32 %v1610, %v1611
      %v1613 = vadd.f32 %v1562, %v1565
      %v1614 = vrot.slane %v1613, 4
      %v1615 = vadd.f32 %v1613, %v1614
      %v1616 = vrot.slane %v1615, 2
      %v1617 = vadd.f32 %v1615, %v1616
      %v1618 = vrot.slane %v1617, 1
      %v1619 = vadd.f32 %v1617, %v1618
      %v1620 = vadd.f32 %v1568, %v1571
      %v1621 = vrot.slane %v1620, 4
      %v1622 = vadd.f32 %v1620, %v1621
      %v1623 = vrot.slane %v1622, 2
      %v1624 = vadd.f32 %v1622, %v1623
      %v1625 = vrot.slane %v1624, 1
      %v1626 = vadd.f32 %v1624, %v1625
      %v1627 = vadd.f32 %v1574, %v1577
      %v1628 = vrot.slane %v1627, 4
      %v1629 = vadd.f32 %v1627, %v1628
      %v1630 = vrot.slane %v1629, 2
      %v1631 = vadd.f32 %v1629, %v1630
      %v1632 = vrot.slane %v1631, 1
      %v1633 = vadd.f32 %v1631, %v1632
      %v1634 = vmul.f32 %v1584, 0.0009765625
      %v1635 = vmul.f32 %v1591, 0.0009765625
      %v1636 = vmul.f32 %v1598, 0.0009765625
      %v1637 = vmul.f32 %v1605, 0.0009765625
      %v1638 = vmul.f32 %v1612, 0.0009765625
      %v1639 = vmul.f32 %v1619, 0.0009765625
      %v1640 = vmul.f32 %v1626, 0.0009765625
      %v1641 = vmul.f32 %v1633, 0.0009765625
      %v1642 = vmul.f32 %v1512, %v1512
      %v1643 = vmul.f32 %v1513, %v1513
      %v1644 = vmul.f32 %v1514, %v1514
      %v1645 = vmul.f32 %v1515, %v1515
      %v1646 = vmul.f32 %v1516, %v1516
      %v1647 = vmul.f32 %v1517, %v1517
      %v1648 = vmul.f32 %v1518, %v1518
      %v1649 = vmul.f32 %v1519, %v1519
      %v1650 = vmul.f32 %v1520, %v1520
      %v1651 = vmul.f32 %v1521, %v1521
      %v1652 = vmul.f32 %v1522, %v1522
      %v1653 = vmul.f32 %v1523, %v1523
      %v1654 = vmul.f32 %v1524, %v1524
      %v1655 = vmul.f32 %v1525, %v1525
      %v1656 = vmul.f32 %v1526, %v1526
      %v1657 = vmul.f32 %v1527, %v1527
      %v1658 = vsel %vm951, %v1642, 0.0
      %1659 = vadd.xlane.f32.xlu0 %v1658
      %v1660 = vpop.xlane.xlu0 %1659
      %v1661 = vsel %vm951, %v1643, 0.0
      %1662 = vadd.xlane.f32.xlu0 %v1661
      %v1663 = vpop.xlane.xlu0 %1662
      %v1664 = vsel %vm951, %v1644, 0.0
      %1665 = vadd.xlane.f32.xlu0 %v1664
      %v1666 = vpop.xlane.xlu0 %1665
      %v1667 = vsel %vm951, %v1645, 0.0
      %1668 = vadd.xlane.f32.xlu0 %v1667
      %v1669 = vpop.xlane.xlu0 %1668
      %v1670 = vsel %vm951, %v1646, 0.0
      %1671 = vadd.xlane.f32.xlu0 %v1670
      %v1672 = vpop.xlane.xlu0 %1671
      %v1673 = vsel %vm951, %v1647, 0.0
      %1674 = vadd.xlane.f32.xlu0 %v1673
      %v1675 = vpop.xlane.xlu0 %1674
      %v1676 = vsel %vm951, %v1648, 0.0
      %1677 = vadd.xlane.f32.xlu0 %v1676
      %v1678 = vpop.xlane.xlu0 %1677
      %v1679 = vsel %vm951, %v1649, 0.0
      %1680 = vadd.xlane.f32.xlu0 %v1679
      %v1681 = vpop.xlane.xlu0 %1680
      %v1682 = vsel %vm951, %v1650, 0.0
      %1683 = vadd.xlane.f32.xlu0 %v1682
      %v1684 = vpop.xlane.xlu0 %1683
      %v1685 = vsel %vm951, %v1651, 0.0
      %1686 = vadd.xlane.f32.xlu0 %v1685
      %v1687 = vpop.xlane.xlu0 %1686
      %v1688 = vsel %vm951, %v1652, 0.0
      %1689 = vadd.xlane.f32.xlu0 %v1688
      %v1690 = vpop.xlane.xlu0 %1689
      %v1691 = vsel %vm951, %v1653, 0.0
      %1692 = vadd.xlane.f32.xlu0 %v1691
      %v1693 = vpop.xlane.xlu0 %1692
      %v1694 = vsel %vm951, %v1654, 0.0
      %1695 = vadd.xlane.f32.xlu0 %v1694
      %v1696 = vpop.xlane.xlu0 %1695
      %v1697 = vsel %vm951, %v1655, 0.0
      %1698 = vadd.xlane.f32.xlu0 %v1697
      %v1699 = vpop.xlane.xlu0 %1698
      %v1700 = vsel %vm951, %v1656, 0.0
      %1701 = vadd.xlane.f32.xlu0 %v1700
      %v1702 = vpop.xlane.xlu0 %1701
      %v1703 = vsel %vm951, %v1657, 0.0
      %1704 = vadd.xlane.f32.xlu0 %v1703
      %v1705 = vpop.xlane.xlu0 %1704
      %v1706 = vadd.f32 %v1660, %v1663
      %v1707 = vrot.slane %v1706, 4
      %v1708 = vadd.f32 %v1706, %v1707
      %v1709 = vrot.slane %v1708, 2
      %v1710 = vadd.f32 %v1708, %v1709
      %v1711 = vrot.slane %v1710, 1
      %v1712 = vadd.f32 %v1710, %v1711
      %v1713 = vadd.f32 %v1666, %v1669
      %v1714 = vrot.slane %v1713, 4
      %v1715 = vadd.f32 %v1713, %v1714
      %v1716 = vrot.slane %v1715, 2
      %v1717 = vadd.f32 %v1715, %v1716
      %v1718 = vrot.slane %v1717, 1
      %v1719 = vadd.f32 %v1717, %v1718
      %v1720 = vadd.f32 %v1672, %v1675
      %v1721 = vrot.slane %v1720, 4
      %v1722 = vadd.f32 %v1720, %v1721
      %v1723 = vrot.slane %v1722, 2
      %v1724 = vadd.f32 %v1722, %v1723
      %v1725 = vrot.slane %v1724, 1
      %v1726 = vadd.f32 %v1724, %v1725
      %v1727 = vadd.f32 %v1678, %v1681
      %v1728 = vrot.slane %v1727, 4
      %v1729 = vadd.f32 %v1727, %v1728
      %v1730 = vrot.slane %v1729, 2
      %v1731 = vadd.f32 %v1729, %v1730
      %v1732 = vrot.slane %v1731, 1
      %v1733 = vadd.f32 %v1731, %v1732
      %v1734 = vadd.f32 %v1684, %v1687
      %v1735 = vrot.slane %v1734, 4
      %v1736 = vadd.f32 %v1734, %v1735
      %v1737 = vrot.slane %v1736, 2
      %v1738 = vadd.f32 %v1736, %v1737
      %v1739 = vrot.slane %v1738, 1
      %v1740 = vadd.f32 %v1738, %v1739
      %v1741 = vadd.f32 %v1690, %v1693
      %v1742 = vrot.slane %v1741, 4
      %v1743 = vadd.f32 %v1741, %v1742
      %v1744 = vrot.slane %v1743, 2
      %v1745 = vadd.f32 %v1743, %v1744
      %v1746 = vrot.slane %v1745, 1
      %v1747 = vadd.f32 %v1745, %v1746
      %v1748 = vadd.f32 %v1696, %v1699
      %v1749 = vrot.slane %v1748, 4
      %v1750 = vadd.f32 %v1748, %v1749
      %v1751 = vrot.slane %v1750, 2
      %v1752 = vadd.f32 %v1750, %v1751
      %v1753 = vrot.slane %v1752, 1
      %v1754 = vadd.f32 %v1752, %v1753
      %v1755 = vadd.f32 %v1702, %v1705
      %v1756 = vrot.slane %v1755, 4
      %v1757 = vadd.f32 %v1755, %v1756
      %v1758 = vrot.slane %v1757, 2
      %v1759 = vadd.f32 %v1757, %v1758
      %v1760 = vrot.slane %v1759, 1
      %v1761 = vadd.f32 %v1759, %v1760
      %v1762 = vmul.f32 %v1712, 0.0009765625
      %v1763 = vmul.f32 %v1719, 0.0009765625
      %v1764 = vmul.f32 %v1726, 0.0009765625
      %v1765 = vmul.f32 %v1733, 0.0009765625
      %v1766 = vmul.f32 %v1740, 0.0009765625
      %v1767 = vmul.f32 %v1747, 0.0009765625
      %v1768 = vmul.f32 %v1754, 0.0009765625
      %v1769 = vmul.f32 %v1761, 0.0009765625
      %v1770 = vmul.f32 %v1634, %v1634
      %v1771 = vmul.f32 %v1635, %v1635
      %v1772 = vmul.f32 %v1636, %v1636
      %v1773 = vmul.f32 %v1637, %v1637
      %v1774 = vmul.f32 %v1638, %v1638
      %v1775 = vmul.f32 %v1639, %v1639
      %v1776 = vmul.f32 %v1640, %v1640
      %v1777 = vmul.f32 %v1641, %v1641
      %v1778 = vsub.f32 %v1762, %v1770
      %v1779 = vsub.f32 %v1763, %v1771
      %v1780 = vsub.f32 %v1764, %v1772
      %v1781 = vsub.f32 %v1765, %v1773
      %v1782 = vsub.f32 %v1766, %v1774
      %v1783 = vsub.f32 %v1767, %v1775
      %v1784 = vsub.f32 %v1768, %v1776
      %v1785 = vsub.f32 %v1769, %v1777
      %v1786 = vadd.f32 %v1778, 1e-05
      %v1787 = vadd.f32 %v1779, 1e-05
      %v1788 = vadd.f32 %v1780, 1e-05
      %v1789 = vadd.f32 %v1781, 1e-05
      %v1790 = vadd.f32 %v1782, 1e-05
      %v1791 = vadd.f32 %v1783, 1e-05
      %v1792 = vadd.f32 %v1784, 1e-05
      %v1793 = vadd.f32 %v1785, 1e-05
      %v1794 = vrsqrt.pop %v1786
      %v1795 = vrsqrt.pop %v1787
      %v1796 = vrsqrt.pop %v1788
      %v1797 = vrsqrt.pop %v1789
      %v1798 = vrsqrt.pop %v1790
      %v1799 = vrsqrt.pop %v1791
      %v1800 = vrsqrt.pop %v1792
      %v1801 = vrsqrt.pop %v1793
      %v1802 = vmul.f32 %v1794, %v1528
      %v1803 = vmul.f32 %v1795, %v1528
      %v1804 = vmul.f32 %v1796, %v1528
      %v1805 = vmul.f32 %v1797, %v1528
      %v1806 = vmul.f32 %v1798, %v1528
      %v1807 = vmul.f32 %v1799, %v1528
      %v1808 = vmul.f32 %v1800, %v1528
      %v1809 = vmul.f32 %v1801, %v1528
      %v1810 = vmul.f32 %v1634, %v1802
      %v1811 = vmul.f32 %v1635, %v1803
      %v1812 = vmul.f32 %v1636, %v1804
      %v1813 = vmul.f32 %v1637, %v1805
      %v1814 = vmul.f32 %v1638, %v1806
      %v1815 = vmul.f32 %v1639, %v1807
      %v1816 = vmul.f32 %v1640, %v1808
      %v1817 = vmul.f32 %v1641, %v1809
      %v1818 = vsub.f32 %v1529, %v1810
      %v1819 = vsub.f32 %v1529, %v1811
      %v1820 = vsub.f32 %v1529, %v1812
      %v1821 = vsub.f32 %v1529, %v1813
      %v1822 = vsub.f32 %v1529, %v1814
      %v1823 = vsub.f32 %v1529, %v1815
      %v1824 = vsub.f32 %v1529, %v1816
      %v1825 = vsub.f32 %v1529, %v1817
      %v1826 = vlaneseq
      %v1827 = vshrl.u32 %v1826, 7
      %v1828 = vsub.s32 0, %v1827
      %v1829 = vrot.slane %v1802, %v1828
      %v1830 = vlaneseq
      %v1831 = vshrl.u32 %v1830, 7
      %v1832 = vsub.s32 0, %v1831
      %v1833 = vrot.slane %v1803, %v1832
      %v1834 = vlaneseq
      %v1835 = vshrl.u32 %v1834, 7
      %v1836 = vsub.s32 0, %v1835
      %v1837 = vrot.slane %v1804, %v1836
      %v1838 = vlaneseq
      %v1839 = vshrl.u32 %v1838, 7
      %v1840 = vsub.s32 0, %v1839
      %v1841 = vrot.slane %v1805, %v1840
      %v1842 = vlaneseq
      %v1843 = vshrl.u32 %v1842, 7
      %v1844 = vsub.s32 0, %v1843
      %v1845 = vrot.slane %v1806, %v1844
      %v1846 = vlaneseq
      %v1847 = vshrl.u32 %v1846, 7
      %v1848 = vsub.s32 0, %v1847
      %v1849 = vrot.slane %v1807, %v1848
      %v1850 = vlaneseq
      %v1851 = vshrl.u32 %v1850, 7
      %v1852 = vsub.s32 0, %v1851
      %v1853 = vrot.slane %v1808, %v1852
      %v1854 = vlaneseq
      %v1855 = vshrl.u32 %v1854, 7
      %v1856 = vsub.s32 0, %v1855
      %v1857 = vrot.slane %v1809, %v1856
      %v1858 = vmul.f32 %v1512, %v1829
      %v1859 = vmul.f32 %v1513, %v1829
      %v1860 = vmul.f32 %v1514, %v1833
      %v1861 = vmul.f32 %v1515, %v1833
      %v1862 = vmul.f32 %v1516, %v1837
      %v1863 = vmul.f32 %v1517, %v1837
      %v1864 = vmul.f32 %v1518, %v1841
      %v1865 = vmul.f32 %v1519, %v1841
      %v1866 = vmul.f32 %v1520, %v1845
      %v1867 = vmul.f32 %v1521, %v1845
      %v1868 = vmul.f32 %v1522, %v1849
      %v1869 = vmul.f32 %v1523, %v1849
      %v1870 = vmul.f32 %v1524, %v1853
      %v1871 = vmul.f32 %v1525, %v1853
      %v1872 = vmul.f32 %v1526, %v1857
      %v1873 = vmul.f32 %v1527, %v1857
      %v1874 = vlaneseq
      %v1875 = vshrl.u32 %v1874, 7
      %v1876 = vsub.s32 0, %v1875
      %v1877 = vrot.slane %v1818, %v1876
      %v1878 = vlaneseq
      %v1879 = vshrl.u32 %v1878, 7
      %v1880 = vsub.s32 0, %v1879
      %v1881 = vrot.slane %v1819, %v1880
      %v1882 = vlaneseq
      %v1883 = vshrl.u32 %v1882, 7
      %v1884 = vsub.s32 0, %v1883
      %v1885 = vrot.slane %v1820, %v1884
      %v1886 = vlaneseq
      %v1887 = vshrl.u32 %v1886, 7
      %v1888 = vsub.s32 0, %v1887
      %v1889 = vrot.slane %v1821, %v1888
      %v1890 = vlaneseq
      %v1891 = vshrl.u32 %v1890, 7
      %v1892 = vsub.s32 0, %v1891
      %v1893 = vrot.slane %v1822, %v1892
      %v1894 = vlaneseq
      %v1895 = vshrl.u32 %v1894, 7
      %v1896 = vsub.s32 0, %v1895
      %v1897 = vrot.slane %v1823, %v1896
      %v1898 = vlaneseq
      %v1899 = vshrl.u32 %v1898, 7
      %v1900 = vsub.s32 0, %v1899
      %v1901 = vrot.slane %v1824, %v1900
      %v1902 = vlaneseq
      %v1903 = vshrl.u32 %v1902, 7
      %v1904 = vsub.s32 0, %v1903
      %v1905 = vrot.slane %v1825, %v1904
      %v1906 = vadd.f32 %v1858, %v1877
      %v1907 = vadd.f32 %v1859, %v1877
      %v1908 = vadd.f32 %v1860, %v1881
      %v1909 = vadd.f32 %v1861, %v1881
      %v1910 = vadd.f32 %v1862, %v1885
      %v1911 = vadd.f32 %v1863, %v1885
      %v1912 = vadd.f32 %v1864, %v1889
      %v1913 = vadd.f32 %v1865, %v1889
      %v1914 = vadd.f32 %v1866, %v1893
      %v1915 = vadd.f32 %v1867, %v1893
      %v1916 = vadd.f32 %v1868, %v1897
      %v1917 = vadd.f32 %v1869, %v1897
      %v1918 = vadd.f32 %v1870, %v1901
      %v1919 = vadd.f32 %v1871, %v1901
      %v1920 = vadd.f32 %v1872, %v1905
      %v1921 = vadd.f32 %v1873, %v1905
      %v1922 = vmul.f32 %v1906, 0.3
      %v1923 = vmul.f32 %v1907, 0.3
      %v1924 = vmul.f32 %v1908, 0.3
      %v1925 = vmul.f32 %v1909, 0.3
      %v1926 = vmul.f32 %v1910, 0.3
      %v1927 = vmul.f32 %v1911, 0.3
      %v1928 = vmul.f32 %v1912, 0.3
      %v1929 = vmul.f32 %v1913, 0.3
      %v1930 = vmul.f32 %v1914, 0.3
      %v1931 = vmul.f32 %v1915, 0.3
      %v1932 = vmul.f32 %v1916, 0.3
      %v1933 = vmul.f32 %v1917, 0.3
      %v1934 = vmul.f32 %v1918, 0.3
      %v1935 = vmul.f32 %v1919, 0.3
      %v1936 = vmul.f32 %v1920, 0.3
      %v1937 = vmul.f32 %v1921, 0.3
      %v1938 = vmax.f32 %v1906, %v1922
      %v1939 = vmax.f32 %v1907, %v1923
      %v1940 = vmax.f32 %v1908, %v1924
      %v1941 = vmax.f32 %v1909, %v1925
      %v1942 = vmax.f32 %v1910, %v1926
      %v1943 = vmax.f32 %v1911, %v1927
      %v1944 = vmax.f32 %v1912, %v1928
      %v1945 = vmax.f32 %v1913, %v1929
      %v1946 = vmax.f32 %v1914, %v1930
      %v1947 = vmax.f32 %v1915, %v1931
      %v1948 = vmax.f32 %v1916, %v1932
      %v1949 = vmax.f32 %v1917, %v1933
      %v1950 = vmax.f32 %v1918, %v1934
      %v1951 = vmax.f32 %v1919, %v1935
      %v1952 = vmax.f32 %v1920, %v1936
      %v1953 = vmax.f32 %v1921, %v1937
      %v1954 = vld [vmem:[%s5] sm:$0xff]
      %v1955 = vld [vmem:[%s5 + $0x8] sm:$0xff]
      %v1956 = vld [vmem:[%s5 + $0x10] sm:$0xff]
      %v1957 = vld [vmem:[%s5 + $0x18] sm:$0xff]
      %v1958 = vld [vmem:[%s5 + $0x20] sm:$0xff]
      %v1959 = vld [vmem:[%s5 + $0x28] sm:$0xff]
      %v1960 = vld [vmem:[%s5 + $0x30] sm:$0xff]
      %v1961 = vld [vmem:[%s5 + $0x38] sm:$0xff]
      %v1962 = vld [vmem:[%s1 + $0x2] sm:$0x1]
      %v1963 = vlaneseq
      %v1964 = vshrl.u32 %v1963, 7
      %v1965 = vsub.s32 0, %v1964
      %v1966 = vrot.slane %v1962, %v1965
      %v1968 = vsel %vm951, %v1938, 0
      %v1971 = vsel %vm951, %v1939, 0
      %v1974 = vsel %vm951, %v1940, 0
      %v1977 = vsel %vm951, %v1941, 0
      %v1980 = vsel %vm951, %v1942, 0
      %v1983 = vsel %vm951, %v1943, 0
      %v1986 = vsel %vm951, %v1944, 0
      %v1989 = vsel %vm951, %v1945, 0
      %v1992 = vsel %vm951, %v1946, 0
      %v1995 = vsel %vm951, %v1947, 0
      %v1998 = vsel %vm951, %v1948, 0
      %v2001 = vsel %vm951, %v1949, 0
      %v2004 = vsel %vm951, %v1950, 0
      %v2007 = vsel %vm951, %v1951, 0
      %v2010 = vsel %vm951, %v1952, 0
      %v2013 = vsel %vm951, %v1953, 0
      %2015 = vmatprep.subr.mxu0 0.0
      %2016 = vmatpush1.msra.mxu0 %v1954
      %2017 = vmatprep.subr.mxu0 0.0
      %2018 = vmatpush1.msra.mxu0 %v1955
      %2019 = vmatprep.subr.mxu0 0.0
      %2020 = vmatpush1.msra.mxu0 %v1956
      %2021 = vmatprep.subr.mxu0 0.0
      %2022 = vmatpush1.msra.mxu0 %v1957
      %2023 = vmatprep.subr.mxu0 0.0
      %2024 = vmatpush1.msra.mxu0 %v1958
      %2025 = vmatprep.subr.mxu0 0.0
      %2026 = vmatpush1.msra.mxu0 %v1959
      %2027 = vmatprep.subr.mxu0 0.0
      %2028 = vmatpush1.msra.mxu0 %v1960
      %2029 = vmatprep.subr.mxu0 0.0
      %2030 = vmatpush1.msra.mxu0 %v1961
      %2031 = vmatprep.subr.mxu0 0.0
      %2032 = vmatpush1.msra.mxu0 0.0
      %2033 = vmatprep.subr.mxu0 0.0
      %2034 = vmatpush1.msra.mxu0 0.0
      %2035 = vmatprep.subr.mxu0 0.0
      %2036 = vmatpush1.msra.mxu0 0.0
      %2037 = vmatprep.subr.mxu0 0.0
      %2038 = vmatpush1.msra.mxu0 0.0
      %2039 = vmatprep.subr.mxu0 0.0
      %2040 = vmatpush1.msra.mxu0 0.0
      %2041 = vmatprep.subr.mxu0 0.0
      %2042 = vmatpush1.msra.mxu0 0.0
      %2043 = vmatprep.subr.mxu0 0.0
      %2044 = vmatpush1.msra.mxu0 0.0
      %2045 = vmatprep.subr.mxu0 0.0
      %2046 = vmatpush1.msra.mxu0 0.0
      %2047 = vmatprep.subr.mxu0 0.0
      %2048 = vmatpush1.msra.mxu0 0.0
      %2049 = vmatprep.subr.mxu0 0.0
      %2050 = vmatpush1.msra.mxu0 0.0
      %2051 = vmatprep.subr.mxu0 0.0
      %2052 = vmatpush1.msra.mxu0 0.0
      %2053 = vmatprep.subr.mxu0 0.0
      %2054 = vmatpush1.msra.mxu0 0.0
      %2055 = vmatprep.subr.mxu0 0.0
      %2056 = vmatpush1.msra.mxu0 0.0
      %2057 = vmatprep.subr.mxu0 0.0
      %2058 = vmatpush1.msra.mxu0 0.0
      %2059 = vmatprep.subr.mxu0 0.0
      %2060 = vmatpush1.msra.mxu0 0.0
      %2061 = vmatprep.subr.mxu0 0.0
      %2062 = vmatpush1.msra.mxu0 0.0
      %2063 = vmatprep.subr.mxu0 0.0
      %2064 = vmatpush1.msra.mxu0 0.0
      %2065 = vmatprep.subr.mxu0 0.0
      %2066 = vmatpush1.msra.mxu0 0.0
      %2067 = vmatprep.subr.mxu0 0.0
      %2068 = vmatpush1.msra.mxu0 0.0
      %2069 = vmatprep.subr.mxu0 0.0
      %2070 = vmatpush1.msra.mxu0 0.0
      %2071 = vmatprep.subr.mxu0 0.0
      %2072 = vmatpush1.msra.mxu0 0.0
      %2073 = vmatprep.subr.mxu0 0.0
      %2074 = vmatpush1.msra.mxu0 0.0
      %2075 = vmatprep.subr.mxu0 0.0
      %2076 = vmatpush1.msra.mxu0 0.0
      %2077 = vmatprep.subr.mxu0 0.0
      %2078 = vmatpush1.msra.mxu0 0.0
      %2079 = vmatprep.mubr.f32.mxu0 0.0
      %2080 = vmatmul.mubr.f32.gmra.mrb[0].mxu0 %v1968
      %v2081 = vpop.f32.mrb[0].mxu0
      %v2082 = vadd.f32 %v1966, %v2081
      %v2083 = vpop.f32.mrb[0].mxu0
      %2084 = vmatprep.mubr.f32.mxu0 0.0
      %2085 = vmatmul.mubr.f32.gmra.mrb[0].mxu0 %v1971
      %v2086 = vpop.f32.mrb[0].mxu0
      %v2087 = vadd.f32 %v1966, %v2086
      %v2088 = vpop.f32.mrb[0].mxu0
      %2089 = vmatprep.mubr.f32.mxu0 0.0
      %2090 = vmatmul.mubr.f32.gmra.mrb[0].mxu0 %v1974
      %v2091 = vpop.f32.mrb[0].mxu0
      %v2092 = vadd.f32 %v1966, %v2091
      %v2093 = vpop.f32.mrb[0].mxu0
      %2094 = vmatprep.mubr.f32.mxu0 0.0
      %2095 = vmatmul.mubr.f32.gmra.mrb[0].mxu0 %v1977
      %v2096 = vpop.f32.mrb[0].mxu0
      %v2097 = vadd.f32 %v1966, %v2096
      %v2098 = vpop.f32.mrb[0].mxu0
      %2099 = vmatprep.mubr.f32.mxu0 0.0
      %2100 = vmatmul.mubr.f32.gmra.mrb[0].mxu0 %v1980
      %v2101 = vpop.f32.mrb[0].mxu0
      %v2102 = vadd.f32 %v1966, %v2101
      %v2103 = vpop.f32.mrb[0].mxu0
      %2104 = vmatprep.mubr.f32.mxu0 0.0
      %2105 = vmatmul.mubr.f32.gmra.mrb[0].mxu0 %v1983
      %v2106 = vpop.f32.mrb[0].mxu0
      %v2107 = vadd.f32 %v1966, %v2106
      %v2108 = vpop.f32.mrb[0].mxu0
      %2109 = vmatprep.mubr.f32.mxu0 0.0
      %2110 = vmatmul.mubr.f32.gmra.mrb[0].mxu0 %v1986
      %v2111 = vpop.f32.mrb[0].mxu0
      %v2112 = vadd.f32 %v1966, %v2111
      %v2113 = vpop.f32.mrb[0].mxu0
      %2114 = vmatprep.mubr.f32.mxu0 0.0
      %2115 = vmatmul.mubr.f32.gmra.mrb[0].mxu0 %v1989
      %v2116 = vpop.f32.mrb[0].mxu0
      %v2117 = vadd.f32 %v1966, %v2116
      %v2118 = vpop.f32.mrb[0].mxu0
      %2119 = vmatprep.mubr.f32.mxu0 0.0
      %2120 = vmatmul.mubr.f32.gmra.mrb[0].mxu0 %v1992
      %v2121 = vpop.f32.mrb[0].mxu0
      %v2122 = vadd.f32 %v1966, %v2121
      %v2123 = vpop.f32.mrb[0].mxu0
      %2124 = vmatprep.mubr.f32.mxu0 0.0
      %2125 = vmatmul.mubr.f32.gmra.mrb[0].mxu0 %v1995
      %v2126 = vpop.f32.mrb[0].mxu0
      %v2127 = vadd.f32 %v1966, %v2126
      %v2128 = vpop.f32.mrb[0].mxu0
      %2129 = vmatprep.mubr.f32.mxu0 0.0
      %2130 = vmatmul.mubr.f32.gmra.mrb[0].mxu0 %v1998
      %v2131 = vpop.f32.mrb[0].mxu0
      %v2132 = vadd.f32 %v1966, %v2131
      %v2133 = vpop.f32.mrb[0].mxu0
      %2134 = vmatprep.mubr.f32.mxu0 0.0
      %2135 = vmatmul.mubr.f32.gmra.mrb[0].mxu0 %v2001
      %v2136 = vpop.f32.mrb[0].mxu0
      %v2137 = vadd.f32 %v1966, %v2136
      %v2138 = vpop.f32.mrb[0].mxu0
      %2139 = vmatprep.mubr.f32.mxu0 0.0
      %2140 = vmatmul.mubr.f32.gmra.mrb[0].mxu0 %v2004
      %v2141 = vpop.f32.mrb[0].mxu0
      %v2142 = vadd.f32 %v1966, %v2141
      %v2143 = vpop.f32.mrb[0].mxu0
      %2144 = vmatprep.mubr.f32.mxu0 0.0
      %2145 = vmatmul.mubr.f32.gmra.mrb[0].mxu0 %v2007
      %v2146 = vpop.f32.mrb[0].mxu0
      %v2147 = vadd.f32 %v1966, %v2146
      %v2148 = vpop.f32.mrb[0].mxu0
      %2149 = vmatprep.mubr.f32.mxu0 0.0
      %2150 = vmatmul.mubr.f32.gmra.mrb[0].mxu0 %v2010
      %v2151 = vpop.f32.mrb[0].mxu0
      %v2152 = vadd.f32 %v1966, %v2151
      %v2153 = vpop.f32.mrb[0].mxu0
      %2154 = vmatprep.mubr.f32.mxu0 0.0
      %2155 = vmatmul.mubr.f32.gmra.mrb[0].mxu0 %v2013
      %v2156 = vpop.f32.mrb[0].mxu0
      %v2157 = vadd.f32 %v1966, %v2156
      %v2158 = vpop.f32.mrb[0].mxu0
      %2159 = vdwg.mxu0
      %2160 = vst.msk [vmem:[%s253] sm:$0xff] %vm273, %v2082
      %2161 = vst.msk [vmem:[%s253 + $0x8] sm:$0xff] %vm273, %v2087
      %2162 = vst.msk [vmem:[%s253 + $0x10] sm:$0xff] %vm273, %v2092
      %2163 = vst.msk [vmem:[%s253 + $0x18] sm:$0xff] %vm273, %v2097
      %2164 = vst.msk [vmem:[%s253 + $0x20] sm:$0xff] %vm273, %v2102
      %2165 = vst.msk [vmem:[%s253 + $0x28] sm:$0xff] %vm273, %v2107
      %2166 = vst.msk [vmem:[%s253 + $0x30] sm:$0xff] %vm273, %v2112
      %2167 = vst.msk [vmem:[%s253 + $0x38] sm:$0xff] %vm273, %v2117
      %2168 = vst.msk [vmem:[%s253 + $0x40] sm:$0xff] %vm273, %v2122
      %2169 = vst.msk [vmem:[%s253 + $0x48] sm:$0xff] %vm273, %v2127
      %2170 = vst.msk [vmem:[%s253 + $0x50] sm:$0xff] %vm273, %v2132
      %2171 = vst.msk [vmem:[%s253 + $0x58] sm:$0xff] %vm273, %v2137
      %2172 = vst.msk [vmem:[%s253 + $0x60] sm:$0xff] %vm273, %v2142
      %2173 = vst.msk [vmem:[%s253 + $0x68] sm:$0xff] %vm273, %v2147
      %2174 = vst.msk [vmem:[%s253 + $0x70] sm:$0xff] %vm273, %v2152
      %2175 = vst.msk [vmem:[%s253 + $0x78] sm:$0xff] %vm273, %v2157
      %s2176 = smul.u32 16, %s17
      %p2177 = scmp.lt.s32.totalorder %s2176, 31
      %s2178 = scalar_select %p2177, %s2176, 31
      %s2179 = smul.addr %s2178, 8
      %s2180 = scalar_lea.vmem %s6, %s2179
      // Predicated region
      $region45: #{tpu_custom_call.1} parent=43 // pred_check
        %p2181 = pneg %p166
      $region46: #{tpu_custom_call.1} parent=43 // pred_check_branch
        %2183 = sbr.rel (%p2181) target = $region48
      $region47: #{tpu_custom_call.1} parent=43 // pred_region
        %s2184 = smul.u32 16, %s17
      $region48: #{tpu_custom_call.1} parent=43 // pred_fallthru
        _
    $region44: #{tpu_custom_call.1} parent=5 // pred_fallthru
      _
    %p2185 = scmp.le.s32.totalorder 2, %s12
    // Predicated region
    $region49: #{tpu_custom_call.1} parent=5 // pred_check
      %p2186 = pneg %p2185
    $region50: #{tpu_custom_call.1} parent=5 // pred_check_branch
      %2188 = sbr.rel (%p2186) target = $region52
    $region51: #{tpu_custom_call.1} parent=5 // pred_region
      %s2189 = ssub.s32 %s12, 2
      // Predicated region
      $region53: #{tpu_custom_call.1} parent=51 // pred_check
        %p2190 = pneg %p172
      $region54: #{tpu_custom_call.1} parent=51 // pred_check_branch
        %2192 = sbr.rel (%p2190) target = $region56
      $region55: #{tpu_custom_call.1} parent=51 // pred_region
        %s2193 = smul.u32 16, %s18
        %p2194 = scmp.lt.s32.totalorder %s2193, 31
        %s2195 = scalar_select %p2194, %s2193, 31
        %s2196 = smul.addr %s2195, 8
        %s2197 = scalar_lea.vmem %s6, %s2196
      $region56: #{tpu_custom_call.1} parent=51 // pred_fallthru
        _
    $region52: #{tpu_custom_call.1} parent=5 // pred_fallthru
      _
  $region6: #{tpu_custom_call.1} parent=0 // loop_footer
    %s16 = sadd.s32 1, %s12
  $region7: #{tpu_custom_call.1} parent=0 // loop_footer_branch
    %11 = sbr.rel target = $region3
  $region8: #{tpu_custom_call.1} parent=0 // loop_exit
    _

</llo_original>
